<compile_context>
chip_gen: v5e
topology: v5e:2x2
jax: 0.10.0
libtpu: 0.0.40
codegen_flags: <defaults>
</compile_context>

<pallas_src>
import functools

import jax
import jax.numpy as jnp
from jax.experimental import pallas as pl
from jax.experimental.pallas import tpu as pltpu


def _round_up(x, m):
    return (x + m - 1) // m * m


def _gat_layer_kernel(x_src_ref, x_dst_ref, adj_ref, w_ref, al_ref, ar_ref,
                      b_ref, out_ref, *, num_heads, head_dim, num_views,
                      apply_relu):
    v = pl.program_id(1)

    @pl.when(v == 0)
    def _():
        out_ref[...] = jnp.zeros_like(out_ref)

    x_src = x_src_ref[...]                       # (Np, Din)  all (padded) nodes
    x_dst = x_dst_ref[...]                       # (Tn, Din)  this dst tile
    w = w_ref[0]                                 # (Din, H*F) pre-transposed weight
    z_src = jnp.dot(x_src, w, preferred_element_type=jnp.float32)   # (Np, H*F)
    z_dst = jnp.dot(x_dst, w, preferred_element_type=jnp.float32)   # (Tn, H*F)

    adj = adj_ref[0]                             # (Tn, Np)   adj[dst, src]
    al = al_ref[0]                               # (1, H*F)
    ar = ar_ref[0]                               # (1, H*F)
    bias = b_ref[0]                              # (1, H*F)

    mask = adj > 0.0

    head_outs = []
    for h in range(num_heads):                   # static, small unrolled loop
        sl = slice(h * head_dim, (h + 1) * head_dim)
        zs = z_src[:, sl]                        # (Np, F)
        zd = z_dst[:, sl]                        # (Tn, F)
        # attention logits: VPU multiply + lane reduce (no tiny MXU matmuls)
        el = jnp.sum(zs * al[:, sl], axis=-1, keepdims=True)   # (Np, 1)  src term
        er = jnp.sum(zd * ar[:, sl], axis=-1, keepdims=True)   # (Tn, 1)  dst term
        e = er + el.T                                          # (Tn, Np)
        e = jnp.where(e > 0, e, 0.2 * e)                       # LeakyReLU(0.2)
        # masked, numerically-stable softmax over src (zero in-degree -> zeros)
        logits = jnp.where(mask, e, -1e30)
        m = jnp.max(logits, axis=-1, keepdims=True)
        p = jnp.where(mask, jnp.exp(logits - m), 0.0)
        denom = jnp.sum(p, axis=-1, keepdims=True)
        alpha = p / jnp.maximum(denom, 1e-30)
        head_outs.append(
            jnp.dot(alpha, zs, preferred_element_type=jnp.float32))  # (Tn, F)

    rst = head_outs[0] if num_heads == 1 else jnp.concatenate(head_outs, axis=-1)
    rst = rst + bias                              # GATConv bias (flattened heads)
    if apply_relu:                                # conv1 activation (per view)
        rst = jnp.maximum(rst, 0.0)
    # mean over views, accumulated in the resident output block
    out_ref[...] += (1.0 / num_views) * rst


def gat_layer(x, adj, w_pt, al, ar, b, *, num_heads, apply_relu,
              tile_n=512, compute_dtype=jnp.float32):
    """One RGATLayer: per-view GATConv + flatten(heads) + mean over views."""
    V, N, _ = adj.shape
    Din = x.shape[1]
    HF = w_pt.shape[1]                            # num_heads * head_dim
    head_dim = HF // num_heads

    # Pre-transpose PyTorch [out, in] weights to [in, out] ONCE, outside the kernel.
    w = jnp.swapaxes(w_pt, 1, 2).astype(compute_dtype)        # (V, Din, HF)

    tn = max(8, min(tile_n, _round_up(N, 8)))     # big dst tiles (multiple of 8)
    Np = _round_up(N, tn)
    x_p = x.astype(compute_dtype)
    adj_p = adj
    if Np != N:
        x_p = jnp.pad(x_p, ((0, Np - N), (0, 0)))
        adj_p = jnp.pad(adj_p, ((0, 0), (0, Np - N), (0, Np - N)))
    grid = (Np // tn, V)                          # dst tiles (parallel) x views (reduce)

    kernel = functools.partial(
        _gat_layer_kernel, num_heads=num_heads, head_dim=head_dim,
        num_views=V, apply_relu=apply_relu)

    cost = pl.CostEstimate(
        flops=int(V * (4 * Np * Din * HF + 2 * Np * Np * HF
                       + 10 * Np * Np * num_heads)),
        transcendentals=int(V * Np * Np * num_heads),
        bytes_accessed=int(4 * (V * Np * Np + 2 * Np * Din + Np * HF
                                + V * Din * HF)),
    )

    out = pl.pallas_call(
        kernel,
        out_shape=jax.ShapeDtypeStruct((Np, HF), jnp.float32),
        grid_spec=pltpu.PrefetchScalarGridSpec(
            num_scalar_prefetch=0,
            grid=grid,
            in_specs=[
                pl.BlockSpec((Np, Din), lambda i, v: (0, 0)),        # all src rows
                pl.BlockSpec((tn, Din), lambda i, v: (i, 0)),        # dst tile rows
                pl.BlockSpec((1, tn, Np), lambda i, v: (v, i, 0)),   # adjacency tile
                pl.BlockSpec((1, Din, HF), lambda i, v: (v, 0, 0)),  # weight (view v)
                pl.BlockSpec((1, 1, HF), lambda i, v: (v, 0, 0)),    # attn_l
                pl.BlockSpec((1, 1, HF), lambda i, v: (v, 0, 0)),    # attn_r
                pl.BlockSpec((1, 1, HF), lambda i, v: (v, 0, 0)),    # bias
            ],
            out_specs=pl.BlockSpec((tn, HF), lambda i, v: (i, 0)),
        ),
        compiler_params=pltpu.CompilerParams(
            dimension_semantics=("parallel", "arbitrary"),
            vmem_limit_bytes=48 * 1024 * 1024,
        ),
        cost_estimate=cost,
    )(x_p, x_p, adj_p, w,
      al.astype(compute_dtype), ar.astype(compute_dtype), b.astype(jnp.float32))
    return out[:N]


def rgat_forward(x, adj, layer1_params, layer2_params, heads, *,
                 tile_n=512, compute_dtype=jnp.float32):
    """RGAT.forward: conv1 (ReLU) -> mean over views -> conv2 -> mean over views."""
    w1, al1, ar1, b1 = layer1_params
    w2, al2, ar2, b2 = layer2_params
    h = gat_layer(x, adj, w1, al1, ar1, b1, num_heads=heads[0], apply_relu=True,
                  tile_n=tile_n, compute_dtype=compute_dtype)
    out = gat_layer(h, adj, w2, al2, ar2, b2, num_heads=heads[1], apply_relu=False,
                    tile_n=tile_n, compute_dtype=compute_dtype)
    return out


# ----------------------- pure-JAX reference (same math) -----------------------
def _gat_layer_ref(x, adj, w_pt, al, ar, b, num_heads, apply_relu):
    V, N, _ = adj.shape
    HF = w_pt.shape[1]
    F = HF // num_heads
    outs = []
    for v in range(V):
        z = x @ w_pt[v].T                                   # (N, HF)
        zh = z.reshape(N, num_heads, F)
        alv = al[v].reshape(num_heads, F)
        arv = ar[v].reshape(num_heads, F)
        el = (zh * alv[None]).sum(-1)                       # (N, H)  src term
        er = (zh * arv[None]).sum(-1)                       # (N, H)  dst term
        e = er[:, None, :] + el[None, :, :]                 # (dst, src, H)
        e = jnp.where(e > 0, e, 0.2 * e)
        mask = adj[v][:, :, None] > 0
        logits = jnp.where(mask, e, -1e30)
        m = logits.max(axis=1, keepdims=True)
        p = jnp.where(mask, jnp.exp(logits - m), 0.0)
        denom = p.sum(axis=1, keepdims=True)
        alpha = p / jnp.maximum(denom, 1e-30)
        rst = jnp.einsum('dsh,shf->dhf', alpha, zh).reshape(N, HF) + b[v]
        if apply_relu:
            rst = jnp.maximum(rst, 0.0)
        outs.append(rst)
    return jnp.stack(outs, 0).mean(0)


def rgat_reference(x, adj, layer1_params, layer2_params, heads):
    h = _gat_layer_ref(x, adj, *layer1_params, heads[0], True)
    return _gat_layer_ref(h, adj, *layer2_params, heads[1], False)


if __name__ == "__main__":
    # Small config: views=2, N=64 nodes, in_dim=16, hid_dim=8, heads=(2,1), out_dim=8
    views, N = 2, 64
    in_dim, hid_dim, out_dim = 16, 8, 8
    heads = (2, 1)

    key = jax.random.PRNGKey(0)
    k_x, k_a, k_l1, k_l2 = jax.random.split(key, 4)

    x = jax.random.normal(k_x, (N, in_dim), jnp.float32)

    # Dense per-view adjacency masks (adj[v, dst, src]) with self-loops.
    rand_edges = (jax.random.uniform(k_a, (views, N, N)) < 0.25).astype(jnp.float32)
    adj = jnp.maximum(rand_edges, jnp.eye(N, dtype=jnp.float32)[None])

    def init_layer(k, din, dout, H):
        ks = jax.random.split(k, 4)
        w_pt = jax.random.normal(ks[0], (views, H * dout, din), jnp.float32) * 0.1
        al = jax.random.normal(ks[1], (views, 1, H * dout), jnp.float32) * 0.1
        ar = jax.random.normal(ks[2], (views, 1, H * dout), jnp.float32) * 0.1
        b = jax.random.normal(ks[3], (views, 1, H * dout), jnp.float32) * 0.1
        return w_pt, al, ar, b

    layer1 = init_layer(k_l1, in_dim, hid_dim, heads[0])
    layer2 = init_layer(k_l2, hid_dim * heads[0], out_dim, heads[1])

    out = rgat_forward(x, adj, layer1, layer2, heads)
    jax.block_until_ready(out)

    ref = rgat_reference(x, adj, layer1, layer2, heads)
    assert out.shape == (N, out_dim * heads[1]), f"bad shape {out.shape}"
    assert bool(jnp.all(jnp.isfinite(out))), "non-finite output"
    assert jnp.allclose(out, ref, atol=5e-3, rtol=5e-3), (
        "mismatch vs reference, max abs diff = "
        f"{float(jnp.max(jnp.abs(out - ref)))}")

    print("KERNEL_OK")
</pallas_src>

<mosaic_0001>
module attributes {stable_mosaic.version = 11 : i64} {
  func.func @_gat_layer_kernel(%arg0: i32, %arg1: i32, %arg2: memref<64x16xf32, #tpu.memory_space<vmem>>, %arg3: memref<64x16xf32, #tpu.memory_space<vmem>>, %arg4: memref<1x64x64xf32, #tpu.memory_space<vmem>>, %arg5: memref<1x16x16xf32, #tpu.memory_space<vmem>>, %arg6: memref<1x1x16xf32, #tpu.memory_space<vmem>>, %arg7: memref<1x1x16xf32, #tpu.memory_space<vmem>>, %arg8: memref<1x1x16xf32, #tpu.memory_space<vmem>>, %arg9: memref<64x16xf32, #tpu.memory_space<vmem>>) attributes {dimension_semantics = [#tpu.dimension_semantics<parallel>, #tpu.dimension_semantics<arbitrary>], iteration_bounds = array<i64: 1, 2>, scalar_prefetch = 0 : i64, scratch_operands = 0 : i64, tpu.core_type = #tpu.core_type<tc>, window_params = [{pipeline_mode = #tpu.pipeline_mode<synchronous>, transform_indices = @transform_0, window_bounds = array<i64: 64, 16>}, {transform_indices = @transform_1, window_bounds = array<i64: 64, 16>}, {transform_indices = @transform_2, window_bounds = array<i64: 1, 64, 64>}, {transform_indices = @transform_3, window_bounds = array<i64: 1, 16, 16>}, {transform_indices = @transform_4, window_bounds = array<i64: 1, 1, 16>}, {transform_indices = @transform_5, window_bounds = array<i64: 1, 1, 16>}, {transform_indices = @transform_6, window_bounds = array<i64: 1, 1, 16>}, {transform_indices = @transform_7, window_bounds = array<i64: 64, 16>}]} {
    %c0_i32 = arith.constant 0 : i32
    %0 = arith.cmpi eq, %arg1, %c0_i32 : i32
    %1 = arith.extui %0 : i1 to i32
    %c0_i32_0 = arith.constant 0 : i32
    %2 = arith.cmpi ne, %1, %c0_i32_0 : i32
    scf.if %2 {
      %cst_47 = arith.constant 0.000000e+00 : f32
      %103 = vector.broadcast %cst_47 : f32 to vector<64x16xf32>
      %c0_48 = arith.constant 0 : index
      %c0_49 = arith.constant 0 : index
      %104 = vector.load %arg9[%c0_48, %c0_49] : memref<64x16xf32, #tpu.memory_space<vmem>>, vector<64x16xf32>
      tpu.vector_store %arg9[%c0_48, %c0_49], %103 {strides = array<i32>} : memref<64x16xf32, #tpu.memory_space<vmem>>, vector<64x16xf32>,
    } else {
    }
    %c0 = arith.constant 0 : index
    %c0_1 = arith.constant 0 : index
    %3 = vector.load %arg2[%c0, %c0_1] : memref<64x16xf32, #tpu.memory_space<vmem>>, vector<64x16xf32>
    %c0_2 = arith.constant 0 : index
    %c0_3 = arith.constant 0 : index
    %4 = vector.load %arg3[%c0_2, %c0_3] : memref<64x16xf32, #tpu.memory_space<vmem>>, vector<64x16xf32>
    %c0_4 = arith.constant 0 : index
    %c0_5 = arith.constant 0 : index
    %c0_6 = arith.constant 0 : index
    %5 = vector.load %arg5[%c0_4, %c0_5, %c0_6] : memref<1x16x16xf32, #tpu.memory_space<vmem>>, vector<1x16x16xf32>
    %6 = vector.shape_cast %5 : vector<1x16x16xf32> to vector<16x16xf32>
    %cst = arith.constant dense<0.000000e+00> : vector<64x16xf32>
    %7 = tpu.matmul %3, %6, %cst {dimension_numbers = #tpu.dot_dimension_numbers<[1], [0], [0], [1], [0, 0, 1, 1], [], []>} : vector<64x16xf32>, vector<16x16xf32>, vector<64x16xf32> -> vector<64x16xf32>
    %cst_7 = arith.constant dense<0.000000e+00> : vector<64x16xf32>
    %8 = tpu.matmul %4, %6, %cst_7 {dimension_numbers = #tpu.dot_dimension_numbers<[1], [0], [0], [1], [0, 0, 1, 1], [], []>} : vector<64x16xf32>, vector<16x16xf32>, vector<64x16xf32> -> vector<64x16xf32>
    %c0_8 = arith.constant 0 : index
    %c0_9 = arith.constant 0 : index
    %c0_10 = arith.constant 0 : index
    %9 = vector.load %arg4[%c0_8, %c0_9, %c0_10] : memref<1x64x64xf32, #tpu.memory_space<vmem>>, vector<1x64x64xf32>
    %10 = vector.shape_cast %9 : vector<1x64x64xf32> to vector<64x64xf32>
    %c0_11 = arith.constant 0 : index
    %c0_12 = arith.constant 0 : index
    %c0_13 = arith.constant 0 : index
    %11 = vector.load %arg6[%c0_11, %c0_12, %c0_13] : memref<1x1x16xf32, #tpu.memory_space<vmem>>, vector<1x1x16xf32>
    %12 = vector.shape_cast %11 : vector<1x1x16xf32> to vector<1x16xf32>
    %c0_14 = arith.constant 0 : index
    %c0_15 = arith.constant 0 : index
    %c0_16 = arith.constant 0 : index
    %13 = vector.load %arg7[%c0_14, %c0_15, %c0_16] : memref<1x1x16xf32, #tpu.memory_space<vmem>>, vector<1x1x16xf32>
    %14 = vector.shape_cast %13 : vector<1x1x16xf32> to vector<1x16xf32>
    %c0_17 = arith.constant 0 : index
    %c0_18 = arith.constant 0 : index
    %c0_19 = arith.constant 0 : index
    %15 = vector.load %arg8[%c0_17, %c0_18, %c0_19] : memref<1x1x16xf32, #tpu.memory_space<vmem>>, vector<1x1x16xf32>
    %16 = vector.shape_cast %15 : vector<1x1x16xf32> to vector<1x16xf32>
    %cst_20 = arith.constant 0.000000e+00 : f32
    %17 = vector.broadcast %cst_20 : f32 to vector<64x64xf32>
    %18 = arith.cmpf ogt, %10, %17 : vector<64x64xf32>
    %19 = vector.extract_strided_slice %7 {offsets = [0, 0], sizes = [64, 8], strides = [1, 1]} : vector<64x16xf32> to vector<64x8xf32>
    %20 = vector.extract_strided_slice %8 {offsets = [0, 0], sizes = [64, 8], strides = [1, 1]} : vector<64x16xf32> to vector<64x8xf32>
    %21 = vector.extract_strided_slice %12 {offsets = [0, 0], sizes = [1, 8], strides = [1, 1]} : vector<1x16xf32> to vector<1x8xf32>
    %22 = vector.broadcast %21 : vector<1x8xf32> to vector<64x8xf32>
    %23 = arith.mulf %19, %22 : vector<64x8xf32>
    %cst_21 = arith.constant dense<0.000000e+00> : vector<64xf32>
    %24 = vector.multi_reduction <add>, %23, %cst_21 [1] : vector<64x8xf32> to vector<64xf32>
    %25 = vector.shape_cast %24 : vector<64xf32> to vector<64x1xf32>
    %26 = vector.extract_strided_slice %14 {offsets = [0, 0], sizes = [1, 8], strides = [1, 1]} : vector<1x16xf32> to vector<1x8xf32>
    %27 = vector.broadcast %26 : vector<1x8xf32> to vector<64x8xf32>
    %28 = arith.mulf %20, %27 : vector<64x8xf32>
    %cst_22 = arith.constant dense<0.000000e+00> : vector<64xf32>
    %29 = vector.multi_reduction <add>, %28, %cst_22 [1] : vector<64x8xf32> to vector<64xf32>
    %30 = vector.shape_cast %29 : vector<64xf32> to vector<64x1xf32>
    %31 = tpu.transpose %25, [1, 0] : vector<64x1xf32> -> vector<1x64xf32>
    %32 = vector.broadcast %30 : vector<64x1xf32> to vector<64x64xf32>
    %33 = vector.broadcast %31 : vector<1x64xf32> to vector<64x64xf32>
    %34 = arith.addf %32, %33 : vector<64x64xf32>
    %cst_23 = arith.constant 0.000000e+00 : f32
    %35 = vector.broadcast %cst_23 : f32 to vector<64x64xf32>
    %36 = arith.cmpf ogt, %34, %35 : vector<64x64xf32>
    %cst_24 = arith.constant 2.000000e-01 : f32
    %37 = vector.broadcast %cst_24 : f32 to vector<64x64xf32>
    %38 = arith.mulf %37, %34 : vector<64x64xf32>
    %39 = arith.select %36, %34, %38 : vector<64x64xi1>, vector<64x64xf32>
    %cst_25 = arith.constant -1.000000e+30 : f32
    %40 = vector.broadcast %cst_25 : f32 to vector<64x64xf32>
    %41 = arith.select %18, %39, %40 : vector<64x64xi1>, vector<64x64xf32>
    %cst_26 = arith.constant dense<0xFF800000> : vector<64xf32>
    %42 = vector.multi_reduction <maximumf>, %41, %cst_26 [1] : vector<64x64xf32> to vector<64xf32>
    %43 = vector.shape_cast %42 : vector<64xf32> to vector<64x1xf32>
    %44 = vector.broadcast %43 : vector<64x1xf32> to vector<64x64xf32>
    %45 = arith.subf %41, %44 : vector<64x64xf32>
    %46 = math.exp %45 : vector<64x64xf32>
    %cst_27 = arith.constant 0.000000e+00 : f32
    %47 = vector.broadcast %cst_27 : f32 to vector<64x64xf32>
    %48 = arith.select %18, %46, %47 : vector<64x64xi1>, vector<64x64xf32>
    %cst_28 = arith.constant dense<0.000000e+00> : vector<64xf32>
    %49 = vector.multi_reduction <add>, %48, %cst_28 [1] : vector<64x64xf32> to vector<64xf32>
    %50 = vector.shape_cast %49 : vector<64xf32> to vector<64x1xf32>
    %cst_29 = arith.constant 1.000000e-30 : f32
    %51 = vector.broadcast %cst_29 : f32 to vector<64x1xf32>
    %52 = arith.maximumf %50, %51 : vector<64x1xf32>
    %53 = vector.broadcast %52 : vector<64x1xf32> to vector<64x64xf32>
    %54 = arith.divf %48, %53 : vector<64x64xf32>
    %cst_30 = arith.constant dense<0.000000e+00> : vector<64x8xf32>
    %55 = tpu.matmul %54, %19, %cst_30 {dimension_numbers = #tpu.dot_dimension_numbers<[1], [0], [0], [1], [0, 0, 1, 1], [], []>} : vector<64x64xf32>, vector<64x8xf32>, vector<64x8xf32> -> vector<64x8xf32>
    %56 = vector.extract_strided_slice %7 {offsets = [0, 8], sizes = [64, 8], strides = [1, 1]} : vector<64x16xf32> to vector<64x8xf32>
    %57 = vector.extract_strided_slice %8 {offsets = [0, 8], sizes = [64, 8], strides = [1, 1]} : vector<64x16xf32> to vector<64x8xf32>
    %58 = vector.extract_strided_slice %12 {offsets = [0, 8], sizes = [1, 8], strides = [1, 1]} : vector<1x16xf32> to vector<1x8xf32>
    %59 = vector.broadcast %58 : vector<1x8xf32> to vector<64x8xf32>
    %60 = arith.mulf %56, %59 : vector<64x8xf32>
    %cst_31 = arith.constant dense<0.000000e+00> : vector<64xf32>
    %61 = vector.multi_reduction <add>, %60, %cst_31 [1] : vector<64x8xf32> to vector<64xf32>
    %62 = vector.shape_cast %61 : vector<64xf32> to vector<64x1xf32>
    %63 = vector.extract_strided_slice %14 {offsets = [0, 8], sizes = [1, 8], strides = [1, 1]} : vector<1x16xf32> to vector<1x8xf32>
    %64 = vector.broadcast %63 : vector<1x8xf32> to vector<64x8xf32>
    %65 = arith.mulf %57, %64 : vector<64x8xf32>
    %cst_32 = arith.constant dense<0.000000e+00> : vector<64xf32>
    %66 = vector.multi_reduction <add>, %65, %cst_32 [1] : vector<64x8xf32> to vector<64xf32>
    %67 = vector.shape_cast %66 : vector<64xf32> to vector<64x1xf32>
    %68 = tpu.transpose %62, [1, 0] : vector<64x1xf32> -> vector<1x64xf32>
    %69 = vector.broadcast %67 : vector<64x1xf32> to vector<64x64xf32>
    %70 = vector.broadcast %68 : vector<1x64xf32> to vector<64x64xf32>
    %71 = arith.addf %69, %70 : vector<64x64xf32>
    %cst_33 = arith.constant 0.000000e+00 : f32
    %72 = vector.broadcast %cst_33 : f32 to vector<64x64xf32>
    %73 = arith.cmpf ogt, %71, %72 : vector<64x64xf32>
    %cst_34 = arith.constant 2.000000e-01 : f32
    %74 = vector.broadcast %cst_34 : f32 to vector<64x64xf32>
    %75 = arith.mulf %74, %71 : vector<64x64xf32>
    %76 = arith.select %73, %71, %75 : vector<64x64xi1>, vector<64x64xf32>
    %cst_35 = arith.constant -1.000000e+30 : f32
    %77 = vector.broadcast %cst_35 : f32 to vector<64x64xf32>
    %78 = arith.select %18, %76, %77 : vector<64x64xi1>, vector<64x64xf32>
    %cst_36 = arith.constant dense<0xFF800000> : vector<64xf32>
    %79 = vector.multi_reduction <maximumf>, %78, %cst_36 [1] : vector<64x64xf32> to vector<64xf32>
    %80 = vector.shape_cast %79 : vector<64xf32> to vector<64x1xf32>
    %81 = vector.broadcast %80 : vector<64x1xf32> to vector<64x64xf32>
    %82 = arith.subf %78, %81 : vector<64x64xf32>
    %83 = math.exp %82 : vector<64x64xf32>
    %cst_37 = arith.constant 0.000000e+00 : f32
    %84 = vector.broadcast %cst_37 : f32 to vector<64x64xf32>
    %85 = arith.select %18, %83, %84 : vector<64x64xi1>, vector<64x64xf32>
    %cst_38 = arith.constant dense<0.000000e+00> : vector<64xf32>
    %86 = vector.multi_reduction <add>, %85, %cst_38 [1] : vector<64x64xf32> to vector<64xf32>
    %87 = vector.shape_cast %86 : vector<64xf32> to vector<64x1xf32>
    %cst_39 = arith.constant 1.000000e-30 : f32
    %88 = vector.broadcast %cst_39 : f32 to vector<64x1xf32>
    %89 = arith.maximumf %87, %88 : vector<64x1xf32>
    %90 = vector.broadcast %89 : vector<64x1xf32> to vector<64x64xf32>
    %91 = arith.divf %85, %90 : vector<64x64xf32>
    %cst_40 = arith.constant dense<0.000000e+00> : vector<64x8xf32>
    %92 = tpu.matmul %91, %56, %cst_40 {dimension_numbers = #tpu.dot_dimension_numbers<[1], [0], [0], [1], [0, 0, 1, 1], [], []>} : vector<64x64xf32>, vector<64x8xf32>, vector<64x8xf32> -> vector<64x8xf32>
    %93 = tpu.concatenate %55, %92 in 1 : vector<64x8xf32>, vector<64x8xf32> -> vector<64x16xf32>
    %94 = vector.broadcast %16 : vector<1x16xf32> to vector<64x16xf32>
    %95 = arith.addf %93, %94 : vector<64x16xf32>
    %cst_41 = arith.constant 0.000000e+00 : f32
    %96 = vector.broadcast %cst_41 : f32 to vector<64x16xf32>
    %97 = arith.maximumf %95, %96 : vector<64x16xf32>
    %c0_42 = arith.constant 0 : index
    %c0_43 = arith.constant 0 : index
    %98 = vector.load %arg9[%c0_42, %c0_43] : memref<64x16xf32, #tpu.memory_space<vmem>>, vector<64x16xf32>
    %cst_44 = arith.constant 5.000000e-01 : f32
    %99 = vector.broadcast %cst_44 : f32 to vector<64x16xf32>
    %100 = arith.mulf %99, %97 : vector<64x16xf32>
    %101 = arith.addf %98, %100 : vector<64x16xf32>
    %c0_45 = arith.constant 0 : index
    %c0_46 = arith.constant 0 : index
    %102 = vector.load %arg9[%c0_45, %c0_46] : memref<64x16xf32, #tpu.memory_space<vmem>>, vector<64x16xf32>
    tpu.vector_store %arg9[%c0_45, %c0_46], %101 {strides = array<i32>} : memref<64x16xf32, #tpu.memory_space<vmem>>, vector<64x16xf32>,
    return
  }
  func.func @transform_0(%arg0: i32, %arg1: i32) -> (i32, i32) {
    %c0_i32 = arith.constant 0 : i32
    %c0_i32_0 = arith.constant 0 : i32
    %c0_i32_1 = arith.constant 0 : i32
    return %c0_i32, %c0_i32_0 : i32, i32
  }
  func.func @transform_1(%arg0: i32, %arg1: i32) -> (i32, i32) {
    %c0_i32 = arith.constant 0 : i32
    %c0_i32_0 = arith.constant 0 : i32
    return %arg0, %c0_i32 : i32, i32
  }
  func.func @transform_2(%arg0: i32, %arg1: i32) -> (i32, i32, i32) {
    %c0_i32 = arith.constant 0 : i32
    %c0_i32_0 = arith.constant 0 : i32
    return %arg1, %arg0, %c0_i32 : i32, i32, i32
  }
  func.func @transform_3(%arg0: i32, %arg1: i32) -> (i32, i32, i32) {
    %c0_i32 = arith.constant 0 : i32
    %c0_i32_0 = arith.constant 0 : i32
    %c0_i32_1 = arith.constant 0 : i32
    return %arg1, %c0_i32, %c0_i32_0 : i32, i32, i32
  }
  func.func @transform_4(%arg0: i32, %arg1: i32) -> (i32, i32, i32) {
    %c0_i32 = arith.constant 0 : i32
    %c0_i32_0 = arith.constant 0 : i32
    %c0_i32_1 = arith.constant 0 : i32
    return %arg1, %c0_i32, %c0_i32_0 : i32, i32, i32
  }
  func.func @transform_5(%arg0: i32, %arg1: i32) -> (i32, i32, i32) {
    %c0_i32 = arith.constant 0 : i32
    %c0_i32_0 = arith.constant 0 : i32
    %c0_i32_1 = arith.constant 0 : i32
    return %arg1, %c0_i32, %c0_i32_0 : i32, i32, i32
  }
  func.func @transform_6(%arg0: i32, %arg1: i32) -> (i32, i32, i32) {
    %c0_i32 = arith.constant 0 : i32
    %c0_i32_0 = arith.constant 0 : i32
    %c0_i32_1 = arith.constant 0 : i32
    return %arg1, %c0_i32, %c0_i32_0 : i32, i32, i32
  }
  func.func @transform_7(%arg0: i32, %arg1: i32) -> (i32, i32) {
    %c0_i32 = arith.constant 0 : i32
    %c0_i32_0 = arith.constant 0 : i32
    return %arg0, %c0_i32 : i32, i32
  }
}

</mosaic_0001>

<llo_original>
// kernel: tpu_custom_call.1
$region0: #{tpu_custom_call.1}
  #allocation0 [shape = 'u32[]', space=smem, size = 0x4, offset = 0x4, fixed_abs, tag = 'smem constant byte address 0x4 - core index']
  #allocation1 [shape = 'u32[72,128]{1,0:T(1,128)}', space=vmem, size = 0x9000, scoped, tag = 'internal scratch']
  %s0 = inlined_call_operand.vmem [shape: f32[64,16], index: 0, kind: input, shape index: {}]
  %s1 = inlined_call_operand.vmem [shape: f32[64,16], index: 1, kind: input, shape index: {}]
  %s2 = inlined_call_operand.vmem [shape: f32[2,64,64], index: 2, kind: input, shape index: {}]
  %s3 = inlined_call_operand.vmem [shape: f32[2,16,16], index: 3, kind: input, shape index: {}]
  %s4 = inlined_call_operand.vmem [shape: f32[2,1,16], index: 4, kind: input, shape index: {}]
  %s5 = inlined_call_operand.hbm [shape: f32[2,1,16], index: 5, kind: input, shape index: {}]
  %s6 = inlined_call_operand.vmem [shape: f32[2,1,16], index: 6, kind: input, shape index: {}]
  %s7 = inlined_call_operand.vmem [shape: f32[64,16], index: 7, kind: output, shape index: {}]
  %s8 = sld [smem:[#allocation0]]
  $region69: #{tpu_custom_call.1} parent=0
    _
  %s10 = ssub.s32 1, %s8
  %s11 = scalar_select 0, %s10, %s8
  $region1: #{tpu_custom_call.1} parent=0
    #allocation2 [shape = 'u8[1024]{0}', space=vmem, size = 0x400, scoped, tag = 'input window, operand 5']
    #allocation3 [shape = 's32[2]{0}', space=sflag, size = 0x8, scoped, tag = 'scoped memory for tpu_custom_call.1']
    %12 = vsyncpa [#allocation3], 0
    %s13 = scalar_lea.sflag [#allocation3], 1
    %14 = vsyncpa %s13, 0
    loop: start=0, step=1, limit=4
    $region2: #{tpu_custom_call.1} parent=1 // loop_pre_header
      _
    $region3: #{tpu_custom_call.1} parent=1 // loop_header
      %s16 = sphi 0, %s20
      %p17 = scmp.ge.s32.totalorder %s16, 4
      %s23 = sphi 0, %s35
      %s24 = sphi 0, %s31
      %s25 = sphi 0, %s23
      %s26 = sphi 0, %s24
      %s27 = sphi 0, %s25
      %s28 = sphi 0, %s26
      %s36 = sphi 0, %s36
      %s38 = sphi 0, %s36
      %s39 = sphi 0, %s38
      %s53 = sphi 0, %s39
      %s59 = sphi 0, %s61
      %s62 = sphi 0, %s59
      %s63 = sphi 0, %s62
      %s79 = sphi 0, %s63
      %s87 = sphi 0, %s89
      %s90 = sphi 0, %s87
      %s91 = sphi 0, %s90
      %s107 = sphi 0, %s91
      %s113 = sphi 0, %s115
      %s116 = sphi 0, %s113
      %s117 = sphi 0, %s116
      %s133 = sphi 0, %s117
      %s139 = sphi 0, %s141
      %s142 = sphi 0, %s139
      %s143 = sphi 0, %s142
      %s159 = sphi 0, %s143
      %s165 = sphi 0, %s167
      %s168 = sphi 0, %s165
      %s169 = sphi 0, %s168
      %s185 = sphi 0, %s169
      %s191 = sphi 0, %s193
      %s194 = sphi 0, %s191
      %s195 = sphi 0, %s194
      %s211 = sphi 0, %s195
      %s217 = sphi 0, %s219
      %s220 = sphi 0, %s217
      %s221 = sphi 0, %s220
      %s237 = sphi 0, %s221
    $region4: #{tpu_custom_call.1} parent=1 // loop_header_branch
      %19 = sbr.rel (%p17) target = $region8
    $region5: #{tpu_custom_call.1} parent=1 // loop_body
      %s21 = ssub.s32 %s16, 1
      %s22 = ssub.s32 %s16, 2
      %s29 = sadd.s32 1, %s24
      %p30 = scmp.ge.s32.totalorder %s29, 2
      %s31 = scalar_select %p30, 0, %s29
      %s32 = sadd.s32 1, %s23
      %s33 = scalar_select %p30, %s32, %s23
      %p34 = scmp.ge.s32.totalorder %s33, 1
      %s35 = scalar_select %p34, 0, %s33
      %s37 = sadd.s32 %s36, 1
      %p40 = scmp.eq.s32.totalorder %s16, 1
      %p41 = scmp.ne.s32.totalorder %s36, %s38
      %p42 = scmp.eq.s32.totalorder %s16, 0
      %p43 = por %p41, %p42
      %p44 = scmp.ne.s32.totalorder %s36, %s38
      %p45 = scmp.eq.s32.totalorder %s21, 1
      %p46 = por %p44, %p45
      %p47 = scmp.ne.s32.totalorder %s38, %s39
      %p48 = scmp.eq.s32.totalorder %s21, 0
      %p49 = por %p47, %p48
      %p50 = scmp.ne.s32.totalorder %s38, %s39
      %p51 = scmp.eq.s32.totalorder %s22, 1
      %p52 = por %p50, %p51
      %p54 = scmp.ne.s32.totalorder %s39, %s53
      %p55 = scmp.eq.s32.totalorder %s22, 0
      %p56 = por %p54, %p55
      %s57 = ssub.s32 %s23, %s35
      %p58 = scmp.eq.s32.totalorder %s57, 0
      %s60 = sadd.s32 %s59, 1
      %s61 = scalar_select %p58, %s59, %s60
      %p64 = pneg %p58
      %p65 = scmp.eq.s32.totalorder %s16, 1
      %p66 = por %p64, %p65
      %p67 = scmp.ne.s32.totalorder %s59, %s62
      %p68 = scmp.eq.s32.totalorder %s16, 0
      %p69 = por %p67, %p68
      %p70 = scmp.ne.s32.totalorder %s59, %s62
      %p71 = scmp.eq.s32.totalorder %s21, 1
      %p72 = por %p70, %p71
      %p73 = scmp.ne.s32.totalorder %s62, %s63
      %p74 = scmp.eq.s32.totalorder %s21, 0
      %p75 = por %p73, %p74
      %p76 = scmp.ne.s32.totalorder %s62, %s63
      %p77 = scmp.eq.s32.totalorder %s22, 1
      %p78 = por %p76, %p77
      %p80 = scmp.ne.s32.totalorder %s63, %s79
      %p81 = scmp.eq.s32.totalorder %s22, 0
      %p82 = por %p80, %p81
      %s83 = ssub.s32 %s24, %s31
      %s84 = ssub.s32 %s23, %s35
      %s85 = sor.u32 %s83, %s84
      %p86 = scmp.eq.s32.totalorder %s85, 0
      %s88 = sadd.s32 %s87, 1
      %s89 = scalar_select %p86, %s87, %s88
      %p92 = pneg %p86
      %p93 = scmp.eq.s32.totalorder %s16, 1
      %p94 = por %p92, %p93
      %p95 = scmp.ne.s32.totalorder %s87, %s90
      %p96 = scmp.eq.s32.totalorder %s16, 0
      %p97 = por %p95, %p96
      %p98 = scmp.ne.s32.totalorder %s87, %s90
      %p99 = scmp.eq.s32.totalorder %s21, 1
      %p100 = por %p98, %p99
      %p101 = scmp.ne.s32.totalorder %s90, %s91
      %p102 = scmp.eq.s32.totalorder %s21, 0
      %p103 = por %p101, %p102
      %p104 = scmp.ne.s32.totalorder %s90, %s91
      %p105 = scmp.eq.s32.totalorder %s22, 1
      %p106 = por %p104, %p105
      %p108 = scmp.ne.s32.totalorder %s91, %s107
      %p109 = scmp.eq.s32.totalorder %s22, 0
      %p110 = por %p108, %p109
      %s111 = ssub.s32 %s24, %s31
      %p112 = scmp.eq.s32.totalorder %s111, 0
      %s114 = sadd.s32 %s113, 1
      %s115 = scalar_select %p112, %s113, %s114
      %p118 = pneg %p112
      %p119 = scmp.eq.s32.totalorder %s16, 1
      %p120 = por %p118, %p119
      %p121 = scmp.ne.s32.totalorder %s113, %s116
      %p122 = scmp.eq.s32.totalorder %s16, 0
      %p123 = por %p121, %p122
      %p124 = scmp.ne.s32.totalorder %s113, %s116
      %p125 = scmp.eq.s32.totalorder %s21, 1
      %p126 = por %p124, %p125
      %p127 = scmp.ne.s32.totalorder %s116, %s117
      %p128 = scmp.eq.s32.totalorder %s21, 0
      %p129 = por %p127, %p128
      %p130 = scmp.ne.s32.totalorder %s116, %s117
      %p131 = scmp.eq.s32.totalorder %s22, 1
      %p132 = por %p130, %p131
      %p134 = scmp.ne.s32.totalorder %s117, %s133
      %p135 = scmp.eq.s32.totalorder %s22, 0
      %p136 = por %p134, %p135
      %s137 = ssub.s32 %s24, %s31
      %p138 = scmp.eq.s32.totalorder %s137, 0
      %s140 = sadd.s32 %s139, 1
      %s141 = scalar_select %p138, %s139, %s140
      %p144 = pneg %p138
      %p145 = scmp.eq.s32.totalorder %s16, 1
      %p146 = por %p144, %p145
      %p147 = scmp.ne.s32.totalorder %s139, %s142
      %p148 = scmp.eq.s32.totalorder %s16, 0
      %p149 = por %p147, %p148
      %p150 = scmp.ne.s32.totalorder %s139, %s142
      %p151 = scmp.eq.s32.totalorder %s21, 1
      %p152 = por %p150, %p151
      %p153 = scmp.ne.s32.totalorder %s142, %s143
      %p154 = scmp.eq.s32.totalorder %s21, 0
      %p155 = por %p153, %p154
      %p156 = scmp.ne.s32.totalorder %s142, %s143
      %p157 = scmp.eq.s32.totalorder %s22, 1
      %p158 = por %p156, %p157
      %p160 = scmp.ne.s32.totalorder %s143, %s159
      %p161 = scmp.eq.s32.totalorder %s22, 0
      %p162 = por %p160, %p161
      %s163 = ssub.s32 %s24, %s31
      %p164 = scmp.eq.s32.totalorder %s163, 0
      %s166 = sadd.s32 %s165, 1
      %s167 = scalar_select %p164, %s165, %s166
      %p170 = pneg %p164
      %p171 = scmp.eq.s32.totalorder %s16, 1
      %p172 = por %p170, %p171
      %p173 = scmp.ne.s32.totalorder %s165, %s168
      %p174 = scmp.eq.s32.totalorder %s16, 0
      %p175 = por %p173, %p174
      %p176 = scmp.ne.s32.totalorder %s165, %s168
      %p177 = scmp.eq.s32.totalorder %s21, 1
      %p178 = por %p176, %p177
      %p179 = scmp.ne.s32.totalorder %s168, %s169
      %p180 = scmp.eq.s32.totalorder %s21, 0
      %p181 = por %p179, %p180
      %p182 = scmp.ne.s32.totalorder %s168, %s169
      %p183 = scmp.eq.s32.totalorder %s22, 1
      %p184 = por %p182, %p183
      %p186 = scmp.ne.s32.totalorder %s169, %s185
      %p187 = scmp.eq.s32.totalorder %s22, 0
      %p188 = por %p186, %p187
      %s189 = ssub.s32 %s24, %s31
      %p190 = scmp.eq.s32.totalorder %s189, 0
      %s192 = sadd.s32 %s191, 1
      %s193 = scalar_select %p190, %s191, %s192
      %p196 = pneg %p190
      %p197 = scmp.eq.s32.totalorder %s16, 1
      %p198 = por %p196, %p197
      %p199 = scmp.ne.s32.totalorder %s191, %s194
      %p200 = scmp.eq.s32.totalorder %s16, 0
      %p201 = por %p199, %p200
      %p202 = scmp.ne.s32.totalorder %s191, %s194
      %p203 = scmp.eq.s32.totalorder %s21, 1
      %p204 = por %p202, %p203
      %p205 = scmp.ne.s32.totalorder %s194, %s195
      %p206 = scmp.eq.s32.totalorder %s21, 0
      %p207 = por %p205, %p206
      %p208 = scmp.ne.s32.totalorder %s194, %s195
      %p209 = scmp.eq.s32.totalorder %s22, 1
      %p210 = por %p208, %p209
      %p212 = scmp.ne.s32.totalorder %s195, %s211
      %p213 = scmp.eq.s32.totalorder %s22, 0
      %p214 = por %p212, %p213
      %s215 = ssub.s32 %s23, %s35
      %p216 = scmp.eq.s32.totalorder %s215, 0
      %s218 = sadd.s32 %s217, 1
      %s219 = scalar_select %p216, %s217, %s218
      %p222 = pneg %p216
      %p223 = scmp.eq.s32.totalorder %s16, 1
      %p224 = por %p222, %p223
      %p225 = scmp.ne.s32.totalorder %s217, %s220
      %p226 = scmp.eq.s32.totalorder %s16, 0
      %p227 = por %p225, %p226
      %p228 = scmp.ne.s32.totalorder %s217, %s220
      %p229 = scmp.eq.s32.totalorder %s21, 1
      %p230 = por %p228, %p229
      %p231 = scmp.ne.s32.totalorder %s220, %s221
      %p232 = scmp.eq.s32.totalorder %s21, 0
      %p233 = por %p231, %p232
      %p234 = scmp.ne.s32.totalorder %s220, %s221
      %p235 = scmp.eq.s32.totalorder %s22, 1
      %p236 = por %p234, %p235
      %p238 = scmp.ne.s32.totalorder %s221, %s237
      %p239 = scmp.eq.s32.totalorder %s22, 0
      %p240 = por %p238, %p239
      %p241 = scmp.le.s32.totalorder 1, %s16
      %p242 = scmp.lt.s32.totalorder %s16, 3
      %p243 = pnand %p241, %p242
      %p244 = pneg %p243
      // Predicated region
      $region9: #{tpu_custom_call.1} parent=5 // pred_check
        _
      $region10: #{tpu_custom_call.1} parent=5 // pred_check_branch
        %246 = sbr.rel (%p243) target = $region12
      $region11: #{tpu_custom_call.1} parent=5 // pred_region
        %s247 = ssub.s32 %s16, 1
        // Predicated region
        $region13: #{tpu_custom_call.1} parent=11 // pred_check
          %p248 = pneg %p49
        $region14: #{tpu_custom_call.1} parent=11 // pred_check_branch
          %250 = sbr.rel (%p248) target = $region16
        $region15: #{tpu_custom_call.1} parent=11 // pred_region
          _
        $region16: #{tpu_custom_call.1} parent=11 // pred_fallthru
          _
        // Predicated region
        $region17: #{tpu_custom_call.1} parent=11 // pred_check
          %p251 = pneg %p75
        $region18: #{tpu_custom_call.1} parent=11 // pred_check_branch
          %253 = sbr.rel (%p251) target = $region20
        $region19: #{tpu_custom_call.1} parent=11 // pred_region
          %s254 = smul.u32 8, %s25
          %p255 = scmp.lt.s32.totalorder %s254, 7
          %s256 = scalar_select %p255, %s254, 7
          %s257 = smul.addr %s256, 8
          %s258 = scalar_lea.vmem %s1, %s257
          %s259 = smul.u32 8, %s25
        $region20: #{tpu_custom_call.1} parent=11 // pred_fallthru
          _
      $region12: #{tpu_custom_call.1} parent=5 // pred_fallthru
        _
      %p260 = scmp.lt.s32.totalorder %s16, 2
      // Predicated region
      $region21: #{tpu_custom_call.1} parent=5 // pred_check
        %p261 = pneg %p260
      $region22: #{tpu_custom_call.1} parent=5 // pred_check_branch
        %263 = sbr.rel (%p261) target = $region24
      $region23: #{tpu_custom_call.1} parent=5 // pred_region
        // Predicated region
        $region25: #{tpu_custom_call.1} parent=23 // pred_check
          %p264 = pneg %p97
        $region26: #{tpu_custom_call.1} parent=23 // pred_check_branch
          %266 = sbr.rel (%p264) target = $region28
        $region27: #{tpu_custom_call.1} parent=23 // pred_region
          %s267 = smul.u32 8, %s23
          %p268 = scmp.lt.s32.totalorder %s24, 1
          %s269 = scalar_select %p268, %s24, 1
          %p270 = scmp.lt.s32.totalorder %s267, 7
          %s271 = scalar_select %p270, %s267, 7
          %s272 = smul.addr %s269, 8
          %s273 = sadd.s32 %s271, %s272
          %s274 = smul.addr %s273, 8
          %s275 = scalar_lea.vmem %s2, %s274
          %s276 = smul.u32 8, %s23
        $region28: #{tpu_custom_call.1} parent=23 // pred_fallthru
          _
        // Predicated region
        $region29: #{tpu_custom_call.1} parent=23 // pred_check
          %p277 = pneg %p123
        $region30: #{tpu_custom_call.1} parent=23 // pred_check_branch
          %279 = sbr.rel (%p277) target = $region32
        $region31: #{tpu_custom_call.1} parent=23 // pred_region
          %p280 = scmp.lt.s32.totalorder %s24, 1
          %s281 = scalar_select %p280, %s24, 1
          %s282 = smul.addr %s281, 2
          %s283 = smul.addr %s282, 8
          %s284 = scalar_lea.vmem %s3, %s283
        $region32: #{tpu_custom_call.1} parent=23 // pred_fallthru
          _
        // Predicated region
        $region33: #{tpu_custom_call.1} parent=23 // pred_check
          %p285 = pneg %p149
        $region34: #{tpu_custom_call.1} parent=23 // pred_check_branch
          %287 = sbr.rel (%p285) target = $region36
        $region35: #{tpu_custom_call.1} parent=23 // pred_region
          %p288 = scmp.lt.s32.totalorder %s24, 1
          %s289 = scalar_select %p288, %s24, 1
          %s290 = scalar_lea.vmem %s4, %s289
        $region36: #{tpu_custom_call.1} parent=23 // pred_fallthru
          _
        // Predicated region
        $region37: #{tpu_custom_call.1} parent=23 // pred_check
          %p291 = pneg %p175
        $region38: #{tpu_custom_call.1} parent=23 // pred_check_branch
          %293 = sbr.rel (%p291) target = $region40
        $region39: #{tpu_custom_call.1} parent=23 // pred_region
          %s294 = sand.u32 %s165, 1
          %s295 = scalar_lea.sflag [#allocation3], %s294
          %s296 = sand.u32 %s165, 1
          %s297 = scalar_lea.vmem [#allocation2], %s296
          %299 = vsyncadd %s295, 0
          %s300 = scalar_lea.hbm %s5, %s24
          %s302 = sshll.u32 %s300, 4
          %s303 = int_to_ptr.hbm [resolvable:$true] %s302
          %s304 = sshll.u32 %s297, 4
          %s305 = int_to_ptr.vmem [resolvable:$true] %s304
          %307 = dma.hbm_to_vmem [thread:$0]  %s303, 16, %s305, %s295
        $region40: #{tpu_custom_call.1} parent=23 // pred_fallthru
          _
        // Predicated region
        $region41: #{tpu_custom_call.1} parent=23 // pred_check
          %p308 = pneg %p201
        $region42: #{tpu_custom_call.1} parent=23 // pred_check_branch
          %310 = sbr.rel (%p308) target = $region44
        $region43: #{tpu_custom_call.1} parent=23 // pred_region
          %p311 = scmp.lt.s32.totalorder %s24, 1
          %s312 = scalar_select %p311, %s24, 1
          %s313 = scalar_lea.vmem %s6, %s312
        $region44: #{tpu_custom_call.1} parent=23 // pred_fallthru
          _
      $region24: #{tpu_custom_call.1} parent=5 // pred_fallthru
        _
      %p314 = scmp.le.s32.totalorder 1, %s16
      %p315 = scmp.lt.s32.totalorder %s16, 3
      %p316 = pnand %p314, %p315
      %p317 = pneg %p316
      // Predicated region
      $region45: #{tpu_custom_call.1} parent=5 // pred_check
        _
      $region46: #{tpu_custom_call.1} parent=5 // pred_check_branch
        %319 = sbr.rel (%p316) target = $region48
      $region47: #{tpu_custom_call.1} parent=5 // pred_region
        %s320 = ssub.s32 %s16, 1
        %s321 = sand.u32 %s168, 1
        %s322 = scalar_lea.sflag [#allocation3], %s321
        %s323 = sand.u32 %s168, 1
        %s324 = scalar_lea.vmem [#allocation2], %s323
        // Predicated region
        $region49: #{tpu_custom_call.1} parent=47 // pred_check
          %p325 = pneg %p181
        $region50: #{tpu_custom_call.1} parent=47 // pred_check_branch
          %327 = sbr.rel (%p325) target = $region52
        $region51: #{tpu_custom_call.1} parent=47 // pred_region
          %329 = dma.done %s322, 16
        $region52: #{tpu_custom_call.1} parent=47 // pred_fallthru
          _
        %p330 = pneg %p49
        %p331 = pneg %p46
        %s332 = smul.u32 8, %s25
        %p333 = scmp.lt.s32.totalorder %s332, 7
        %s334 = scalar_select %p333, %s332, 7
        %s335 = smul.addr %s334, 8
        %s336 = scalar_lea.vmem %s1, %s335
        %p337 = pneg %p75
        %p338 = pneg %p72
        %s339 = smul.u32 8, %s25
        %p340 = scmp.lt.s32.totalorder %s26, 1
        %s341 = scalar_select %p340, %s26, 1
        %p342 = scmp.lt.s32.totalorder %s339, 7
        %s343 = scalar_select %p342, %s339, 7
        %s344 = smul.addr %s341, 8
        %s345 = sadd.s32 %s343, %s344
        %s346 = smul.addr %s345, 8
        %s347 = scalar_lea.vmem %s2, %s346
        %p348 = pneg %p103
        %p349 = pneg %p100
        %p350 = scmp.lt.s32.totalorder %s26, 1
        %s351 = scalar_select %p350, %s26, 1
        %s352 = smul.addr %s351, 2
        %s353 = smul.addr %s352, 8
        %s354 = scalar_lea.vmem %s3, %s353
        %p355 = pneg %p129
        %p356 = pneg %p126
        %p357 = scmp.lt.s32.totalorder %s26, 1
        %s358 = scalar_select %p357, %s26, 1
        %s359 = scalar_lea.vmem %s4, %s358
        %p360 = pneg %p155
        %p361 = pneg %p152
        %s362 = sand.u32 %s168, 1
        %s363 = scalar_lea.sflag [#allocation3], %s362
        %s364 = sand.u32 %s168, 1
        %s365 = scalar_lea.vmem [#allocation2], %s364
        %p366 = pneg %p181
        %p367 = pneg %p178
        %p368 = scmp.lt.s32.totalorder %s26, 1
        %s369 = scalar_select %p368, %s26, 1
        %s370 = scalar_lea.vmem %s6, %s369
        %p371 = pneg %p207
        %p372 = pneg %p204
        %p373 = pneg %p233
        %p374 = pneg %p230
        %s375 = smul.u32 8, %s25
        %p376 = scmp.lt.s32.totalorder %s375, 7
        %s377 = scalar_select %p376, %s375, 7
        %s378 = smul.addr %s377, 8
        %s379 = scalar_lea.vmem %s7, %s378
        %s380 = smul.u32 8, %s25
        %p381 = scmp.lt.s32.totalorder %s380, 7
        %s382 = scalar_select %p381, %s380, 7
        %s383 = smul.addr %s382, 8
        %s384 = scalar_lea.vmem %s1, %s383
        %s385 = smul.u32 8, %s25
        %s386 = smul.u32 8, %s25
        %p387 = scmp.lt.s32.totalorder %s26, 1
        %s388 = scalar_select %p387, %s26, 1
        %p389 = scmp.lt.s32.totalorder %s386, 7
        %s390 = scalar_select %p389, %s386, 7
        %s391 = smul.addr %s388, 8
        %s392 = sadd.s32 %s390, %s391
        %s393 = smul.addr %s392, 8
        %s394 = scalar_lea.vmem %s2, %s393
        %s395 = smul.u32 8, %s25
        %p396 = scmp.lt.s32.totalorder %s26, 1
        %s397 = scalar_select %p396, %s26, 1
        %s398 = smul.addr %s397, 2
        %s399 = smul.addr %s398, 8
        %s400 = scalar_lea.vmem %s3, %s399
        %p401 = scmp.lt.s32.totalorder %s26, 1
        %s402 = scalar_select %p401, %s26, 1
        %s403 = scalar_lea.vmem %s4, %s402
        %p404 = scmp.lt.s32.totalorder %s26, 1
        %s405 = scalar_select %p404, %s26, 1
        %s406 = scalar_lea.vmem %s6, %s405
        %s407 = smul.u32 8, %s25
        %p408 = scmp.lt.s32.totalorder %s407, 7
        %s409 = scalar_select %p408, %s407, 7
        %s410 = smul.addr %s409, 8
        %s411 = scalar_lea.vmem %s7, %s410
        %s412 = smul.u32 8, %s25
        %p413 = scmp.eq.s32.totalorder %s26, 0
        // Predicated region
        $region53: #{tpu_custom_call.1} parent=47 // pred_check
          %p414 = pneg %p413
        $region54: #{tpu_custom_call.1} parent=47 // pred_check_branch
          %416 = sbr.rel (%p414) target = $region56
        $region55: #{tpu_custom_call.1} parent=47 // pred_region
          %vm417 = vcmask 130048
          %418 = vst.msk [vmem:[%s411] sm:$0xff] %vm417, 0.0
          %419 = vst.msk [vmem:[%s411 + $0x8] sm:$0xff] %vm417, 0.0
          %420 = vst.msk [vmem:[%s411 + $0x10] sm:$0xff] %vm417, 0.0
          %421 = vst.msk [vmem:[%s411 + $0x18] sm:$0xff] %vm417, 0.0
          %422 = vst.msk [vmem:[%s411 + $0x20] sm:$0xff] %vm417, 0.0
          %423 = vst.msk [vmem:[%s411 + $0x28] sm:$0xff] %vm417, 0.0
          %424 = vst.msk [vmem:[%s411 + $0x30] sm:$0xff] %vm417, 0.0
          %425 = vst.msk [vmem:[%s411 + $0x38] sm:$0xff] %vm417, 0.0
        $region56: #{tpu_custom_call.1} parent=47 // pred_fallthru
          _
        %v426 = vld [vmem:[%s0] sm:$0xff]
        %v427 = vld [vmem:[%s0 + $0x8] sm:$0xff]
        %v428 = vld [vmem:[%s0 + $0x10] sm:$0xff]
        %v429 = vld [vmem:[%s0 + $0x18] sm:$0xff]
        %v430 = vld [vmem:[%s0 + $0x20] sm:$0xff]
        %v431 = vld [vmem:[%s0 + $0x28] sm:$0xff]
        %v432 = vld [vmem:[%s0 + $0x30] sm:$0xff]
        %v433 = vld [vmem:[%s0 + $0x38] sm:$0xff]
        %v434 = vld [vmem:[%s384] sm:$0xff]
        %v435 = vld [vmem:[%s384 + $0x8] sm:$0xff]
        %v436 = vld [vmem:[%s384 + $0x10] sm:$0xff]
        %v437 = vld [vmem:[%s384 + $0x18] sm:$0xff]
        %v438 = vld [vmem:[%s384 + $0x20] sm:$0xff]
        %v439 = vld [vmem:[%s384 + $0x28] sm:$0xff]
        %v440 = vld [vmem:[%s384 + $0x30] sm:$0xff]
        %v441 = vld [vmem:[%s384 + $0x38] sm:$0xff]
        %v442 = vld [vmem:[%s400] sm:$0xff]
        %v443 = vld [vmem:[%s400 + $0x8] sm:$0xff]
        %vm444 = vcmask 130048
        %v446 = vsel %vm444, %v426, 0
        %v449 = vsel %vm444, %v427, 0
        %v452 = vsel %vm444, %v428, 0
        %v455 = vsel %vm444, %v429, 0
        %v458 = vsel %vm444, %v430, 0
        %v461 = vsel %vm444, %v431, 0
        %v464 = vsel %vm444, %v432, 0
        %v467 = vsel %vm444, %v433, 0
        %469 = vmatpush.msra.mxu0 0.0
        %470 = vmatpush.msra.mxu0 0.0
        %471 = vmatpush.msra.mxu0 0.0
        %472 = vmatpush.msra.mxu0 0.0
        %473 = vmatpush.msra.mxu0 0.0
        %474 = vmatpush.msra.mxu0 0.0
        %475 = vmatpush.msra.mxu0 0.0
        %476 = vmatpush.msra.mxu0 0.0
        %477 = vmatpush.msra.mxu0 0.0
        %478 = vmatpush.msra.mxu0 0.0
        %479 = vmatpush.msra.mxu0 0.0
        %480 = vmatpush.msra.mxu0 0.0
        %481 = vmatpush.msra.mxu0 0.0
        %482 = vmatpush.msra.mxu0 0.0
        %483 = vmatpush.msra.mxu0 %v443
        %484 = vmatpush.msra.mxu0 %v442
        %485 = vmatmul.f32.gmra.mxu0 %v446
        %v486 = vpop.f32.mrf.mxu0
        %v487 = vadd.f32 0.0, %v486
        %488 = vmatmul.f32.gmra.mxu0 %v449
        %v489 = vpop.f32.mrf.mxu0
        %v490 = vadd.f32 0.0, %v489
        %491 = vmatmul.f32.gmra.mxu0 %v452
        %v492 = vpop.f32.mrf.mxu0
        %v493 = vadd.f32 0.0, %v492
        %494 = vmatmul.f32.gmra.mxu0 %v455
        %v495 = vpop.f32.mrf.mxu0
        %v496 = vadd.f32 0.0, %v495
        %497 = vmatmul.f32.gmra.mxu0 %v458
        %v498 = vpop.f32.mrf.mxu0
        %v499 = vadd.f32 0.0, %v498
        %500 = vmatmul.f32.gmra.mxu0 %v461
        %v501 = vpop.f32.mrf.mxu0
        %v502 = vadd.f32 0.0, %v501
        %503 = vmatmul.f32.gmra.mxu0 %v464
        %v504 = vpop.f32.mrf.mxu0
        %v505 = vadd.f32 0.0, %v504
        %506 = vmatmul.f32.gmra.mxu0 %v467
        %v507 = vpop.f32.mrf.mxu0
        %v508 = vadd.f32 0.0, %v507
        %509 = vdwg.mxu0
        %v511 = vsel %vm444, %v434, 0
        %v514 = vsel %vm444, %v435, 0
        %v517 = vsel %vm444, %v436, 0
        %v520 = vsel %vm444, %v437, 0
        %v523 = vsel %vm444, %v438, 0
        %v526 = vsel %vm444, %v439, 0
        %v529 = vsel %vm444, %v440, 0
        %v532 = vsel %vm444, %v441, 0
        %534 = vmatpush.msra.mxu0 0.0
        %535 = vmatpush.msra.mxu0 0.0
        %536 = vmatpush.msra.mxu0 0.0
        %537 = vmatpush.msra.mxu0 0.0
        %538 = vmatpush.msra.mxu0 0.0
        %539 = vmatpush.msra.mxu0 0.0
        %540 = vmatpush.msra.mxu0 0.0
        %541 = vmatpush.msra.mxu0 0.0
        %542 = vmatpush.msra.mxu0 0.0
        %543 = vmatpush.msra.mxu0 0.0
        %544 = vmatpush.msra.mxu0 0.0
        %545 = vmatpush.msra.mxu0 0.0
        %546 = vmatpush.msra.mxu0 0.0
        %547 = vmatpush.msra.mxu0 0.0
        %548 = vmatpush.msra.mxu0 %v443
        %549 = vmatpush.msra.mxu0 %v442
        %550 = vmatmul.f32.gmra.mxu0 %v511
        %v551 = vpop.f32.mrf.mxu0
        %v552 = vadd.f32 0.0, %v551
        %553 = vmatmul.f32.gmra.mxu0 %v514
        %v554 = vpop.f32.mrf.mxu0
        %v555 = vadd.f32 0.0, %v554
        %556 = vmatmul.f32.gmra.mxu0 %v517
        %v557 = vpop.f32.mrf.mxu0
        %v558 = vadd.f32 0.0, %v557
        %559 = vmatmul.f32.gmra.mxu0 %v520
        %v560 = vpop.f32.mrf.mxu0
        %v561 = vadd.f32 0.0, %v560
        %562 = vmatmul.f32.gmra.mxu0 %v523
        %v563 = vpop.f32.mrf.mxu0
        %v564 = vadd.f32 0.0, %v563
        %565 = vmatmul.f32.gmra.mxu0 %v526
        %v566 = vpop.f32.mrf.mxu0
        %v567 = vadd.f32 0.0, %v566
        %568 = vmatmul.f32.gmra.mxu0 %v529
        %v569 = vpop.f32.mrf.mxu0
        %v570 = vadd.f32 0.0, %v569
        %571 = vmatmul.f32.gmra.mxu0 %v532
        %v572 = vpop.f32.mrf.mxu0
        %v573 = vadd.f32 0.0, %v572
        %574 = vdwg.mxu0
        %v575 = vld [vmem:[%s394] sm:$0xff]
        %v576 = vld [vmem:[%s394 + $0x8] sm:$0xff]
        %v577 = vld [vmem:[%s394 + $0x10] sm:$0xff]
        %v578 = vld [vmem:[%s394 + $0x18] sm:$0xff]
        %v579 = vld [vmem:[%s394 + $0x20] sm:$0xff]
        %v580 = vld [vmem:[%s394 + $0x28] sm:$0xff]
        %v581 = vld [vmem:[%s394 + $0x30] sm:$0xff]
        %v582 = vld [vmem:[%s394 + $0x38] sm:$0xff]
        %v583 = vld [vmem:[%s403] sm:$0x1]
        %v584 = vld [vmem:[%s324] sm:$0x1]
        %v585 = vld [vmem:[%s406] sm:$0x1]
        %vm586 = vcmp.gt.f32.partialorder %v575, 0.0
        %vm587 = vcmp.gt.f32.partialorder %v576, 0.0
        %vm588 = vcmp.gt.f32.partialorder %v577, 0.0
        %vm589 = vcmp.gt.f32.partialorder %v578, 0.0
        %vm590 = vcmp.gt.f32.partialorder %v579, 0.0
        %vm591 = vcmp.gt.f32.partialorder %v580, 0.0
        %vm592 = vcmp.gt.f32.partialorder %v581, 0.0
        %vm593 = vcmp.gt.f32.partialorder %v582, 0.0
        %v595 = vperm.slane %v583, 0
        %v597 = vmul.f32 %v487, %v595
        %v598 = vmul.f32 %v490, %v595
        %v599 = vmul.f32 %v493, %v595
        %v600 = vmul.f32 %v496, %v595
        %v601 = vmul.f32 %v499, %v595
        %v602 = vmul.f32 %v502, %v595
        %v603 = vmul.f32 %v505, %v595
        %v604 = vmul.f32 %v508, %v595
        %vm605 = vcmask 64512
        %v606 = vsel %vm605, %v597, 0.0
        %607 = vadd.xlane.f32.xlu0 %v606
        %v608 = vpop.xlane.xlu0 %607
        %v609 = vsel %vm605, %v598, 0.0
        %610 = vadd.xlane.f32.xlu0 %v609
        %v611 = vpop.xlane.xlu0 %610
        %v612 = vsel %vm605, %v599, 0.0
        %613 = vadd.xlane.f32.xlu0 %v612
        %v614 = vpop.xlane.xlu0 %613
        %v615 = vsel %vm605, %v600, 0.0
        %616 = vadd.xlane.f32.xlu0 %v615
        %v617 = vpop.xlane.xlu0 %616
        %v618 = vsel %vm605, %v601, 0.0
        %619 = vadd.xlane.f32.xlu0 %v618
        %v620 = vpop.xlane.xlu0 %619
        %v621 = vsel %vm605, %v602, 0.0
        %622 = vadd.xlane.f32.xlu0 %v621
        %v623 = vpop.xlane.xlu0 %622
        %v624 = vsel %vm605, %v603, 0.0
        %625 = vadd.xlane.f32.xlu0 %v624
        %v626 = vpop.xlane.xlu0 %625
        %v627 = vsel %vm605, %v604, 0.0
        %628 = vadd.xlane.f32.xlu0 %v627
        %v629 = vpop.xlane.xlu0 %628
        %v631 = vperm.slane %v584, 0
        %v633 = vmul.f32 %v552, %v631
        %v634 = vmul.f32 %v555, %v631
        %v635 = vmul.f32 %v558, %v631
        %v636 = vmul.f32 %v561, %v631
        %v637 = vmul.f32 %v564, %v631
        %v638 = vmul.f32 %v567, %v631
        %v639 = vmul.f32 %v570, %v631
        %v640 = vmul.f32 %v573, %v631
        %v641 = vsel %vm605, %v633, 0.0
        %642 = vadd.xlane.f32.xlu0 %v641
        %v643 = vpop.xlane.xlu0 %642
        %v644 = vsel %vm605, %v634, 0.0
        %645 = vadd.xlane.f32.xlu0 %v644
        %v646 = vpop.xlane.xlu0 %645
        %v647 = vsel %vm605, %v635, 0.0
        %648 = vadd.xlane.f32.xlu0 %v647
        %v649 = vpop.xlane.xlu0 %648
        %v650 = vsel %vm605, %v636, 0.0
        %651 = vadd.xlane.f32.xlu0 %v650
        %v652 = vpop.xlane.xlu0 %651
        %v653 = vsel %vm605, %v637, 0.0
        %654 = vadd.xlane.f32.xlu0 %v653
        %v655 = vpop.xlane.xlu0 %654
        %v656 = vsel %vm605, %v638, 0.0
        %657 = vadd.xlane.f32.xlu0 %v656
        %v658 = vpop.xlane.xlu0 %657
        %v659 = vsel %vm605, %v639, 0.0
        %660 = vadd.xlane.f32.xlu0 %v659
        %v661 = vpop.xlane.xlu0 %660
        %v662 = vsel %vm605, %v640, 0.0
        %663 = vadd.xlane.f32.xlu0 %v662
        %v664 = vpop.xlane.xlu0 %663
        %665 = vxpose.xlu0.b32.start [1/16] %v608, 128
        %666 = vxpose.xlu0.b32.cont [2/16] %v611, 128
        %667 = vxpose.xlu0.b32.cont [3/16] %v614, 128
        %668 = vxpose.xlu0.b32.cont [4/16] %v617, 128
        %669 = vxpose.xlu0.b32.cont [5/16] %v620, 128
        %670 = vxpose.xlu0.b32.cont [6/16] %v623, 128
        %671 = vxpose.xlu0.b32.cont [7/16] %v626, 128
        %672 = vxpose.xlu0.b32.cont [8/16] %v629, 128
        %673 = vxpose.xlu0.b32.cont [9/16] 0.0, 128
        %674 = vxpose.xlu0.b32.cont [10/16] 0.0, 128
        %675 = vxpose.xlu0.b32.cont [11/16] 0.0, 128
        %676 = vxpose.xlu0.b32.cont [12/16] 0.0, 128
        %677 = vxpose.xlu0.b32.cont [13/16] 0.0, 128
        %678 = vxpose.xlu0.b32.cont [14/16] 0.0, 128
        %679 = vxpose.xlu0.b32.cont [15/16] 0.0, 128
        %680 = vxpose.xlu0.b32.end [16/16] 0.0, 128
        %v681 = vpop.trf.xlu0
        %v682 = vpop.trf.xlu0
        %v683 = vpop.trf.xlu0
        %v684 = vpop.trf.xlu0
        %v685 = vpop.trf.xlu0
        %v686 = vpop.trf.xlu0
        %v687 = vpop.trf.xlu0
        %v688 = vpop.trf.xlu0
        %v689 = vpop.trf.xlu0
        %v690 = vpop.trf.xlu0
        %v691 = vpop.trf.xlu0
        %v692 = vpop.trf.xlu0
        %v693 = vpop.trf.xlu0
        %v694 = vpop.trf.xlu0
        %v695 = vpop.trf.xlu0
        %v696 = vpop.trf.xlu0
        %v697 = vperm.slane %v681, 0
        %v698 = vadd.f32 %v643, %v697
        %v699 = vadd.f32 %v646, %v697
        %v700 = vadd.f32 %v649, %v697
        %v701 = vadd.f32 %v652, %v697
        %v702 = vadd.f32 %v655, %v697
        %v703 = vadd.f32 %v658, %v697
        %v704 = vadd.f32 %v661, %v697
        %v705 = vadd.f32 %v664, %v697
        %vm706 = vcmp.gt.f32.partialorder %v698, 0.0
        %vm707 = vcmp.gt.f32.partialorder %v699, 0.0
        %vm708 = vcmp.gt.f32.partialorder %v700, 0.0
        %vm709 = vcmp.gt.f32.partialorder %v701, 0.0
        %vm710 = vcmp.gt.f32.partialorder %v702, 0.0
        %vm711 = vcmp.gt.f32.partialorder %v703, 0.0
        %vm712 = vcmp.gt.f32.partialorder %v704, 0.0
        %vm713 = vcmp.gt.f32.partialorder %v705, 0.0
        %v714 = vmul.f32 %v698, 0.2
        %v715 = vmul.f32 %v699, 0.2
        %v716 = vmul.f32 %v700, 0.2
        %v717 = vmul.f32 %v701, 0.2
        %v718 = vmul.f32 %v702, 0.2
        %v719 = vmul.f32 %v703, 0.2
        %v720 = vmul.f32 %v704, 0.2
        %v721 = vmul.f32 %v705, 0.2
        %v722 = vsel %vm706, %v698, %v714
        %v723 = vsel %vm707, %v699, %v715
        %v724 = vsel %vm708, %v700, %v716
        %v725 = vsel %vm709, %v701, %v717
        %v726 = vsel %vm710, %v702, %v718
        %v727 = vsel %vm711, %v703, %v719
        %v728 = vsel %vm712, %v704, %v720
        %v729 = vsel %vm713, %v705, %v721
        %v730 = vsel %vm586, %v722, -1e+30
        %v731 = vsel %vm587, %v723, -1e+30
        %v732 = vsel %vm588, %v724, -1e+30
        %v733 = vsel %vm589, %v725, -1e+30
        %v734 = vsel %vm590, %v726, -1e+30
        %v735 = vsel %vm591, %v727, -1e+30
        %v736 = vsel %vm592, %v728, -1e+30
        %v737 = vsel %vm593, %v729, -1e+30
        %vm738 = vcmask 523264
        %v739 = vsel %vm738, %v730, -inf
        %740 = vmax.xlane.f32.xlu0 %v739
        %v741 = vpop.xlane.xlu0 %740
        %v742 = vsel %vm738, %v731, -inf
        %743 = vmax.xlane.f32.xlu0 %v742
        %v744 = vpop.xlane.xlu0 %743
        %v745 = vsel %vm738, %v732, -inf
        %746 = vmax.xlane.f32.xlu0 %v745
        %v747 = vpop.xlane.xlu0 %746
        %v748 = vsel %vm738, %v733, -inf
        %749 = vmax.xlane.f32.xlu0 %v748
        %v750 = vpop.xlane.xlu0 %749
        %v751 = vsel %vm738, %v734, -inf
        %752 = vmax.xlane.f32.xlu0 %v751
        %v753 = vpop.xlane.xlu0 %752
        %v754 = vsel %vm738, %v735, -inf
        %755 = vmax.xlane.f32.xlu0 %v754
        %v756 = vpop.xlane.xlu0 %755
        %v757 = vsel %vm738, %v736, -inf
        %758 = vmax.xlane.f32.xlu0 %v757
        %v759 = vpop.xlane.xlu0 %758
        %v760 = vsel %vm738, %v737, -inf
        %761 = vmax.xlane.f32.xlu0 %v760
        %v762 = vpop.xlane.xlu0 %761
        %v763 = vsub.f32 %v730, %v741
        %v764 = vsub.f32 %v731, %v744
        %v765 = vsub.f32 %v732, %v747
        %v766 = vsub.f32 %v733, %v750
        %v767 = vsub.f32 %v734, %v753
        %v768 = vsub.f32 %v735, %v756
        %v769 = vsub.f32 %v736, %v759
        %v770 = vsub.f32 %v737, %v762
        %v771 = vmul.f32 %v763, 1.442695
        %v772 = vpow.pop %v771
        %v773 = vmul.f32 %v764, 1.442695
        %v774 = vpow.pop %v773
        %v775 = vmul.f32 %v765, 1.442695
        %v776 = vpow.pop %v775
        %v777 = vmul.f32 %v766, 1.442695
        %v778 = vpow.pop %v777
        %v779 = vmul.f32 %v767, 1.442695
        %v780 = vpow.pop %v779
        %v781 = vmul.f32 %v768, 1.442695
        %v782 = vpow.pop %v781
        %v783 = vmul.f32 %v769, 1.442695
        %v784 = vpow.pop %v783
        %v785 = vmul.f32 %v770, 1.442695
        %v786 = vpow.pop %v785
        %v787 = vsel %vm586, %v772, 0.0
        %v788 = vsel %vm587, %v774, 0.0
        %v789 = vsel %vm588, %v776, 0.0
        %v790 = vsel %vm589, %v778, 0.0
        %v791 = vsel %vm590, %v780, 0.0
        %v792 = vsel %vm591, %v782, 0.0
        %v793 = vsel %vm592, %v784, 0.0
        %v794 = vsel %vm593, %v786, 0.0
        %v795 = vsel %vm738, %v787, 0.0
        %796 = vadd.xlane.f32.xlu0 %v795
        %v797 = vpop.xlane.xlu0 %796
        %v798 = vsel %vm738, %v788, 0.0
        %799 = vadd.xlane.f32.xlu0 %v798
        %v800 = vpop.xlane.xlu0 %799
        %v801 = vsel %vm738, %v789, 0.0
        %802 = vadd.xlane.f32.xlu0 %v801
        %v803 = vpop.xlane.xlu0 %802
        %v804 = vsel %vm738, %v790, 0.0
        %805 = vadd.xlane.f32.xlu0 %v804
        %v806 = vpop.xlane.xlu0 %805
        %v807 = vsel %vm738, %v791, 0.0
        %808 = vadd.xlane.f32.xlu0 %v807
        %v809 = vpop.xlane.xlu0 %808
        %v810 = vsel %vm738, %v792, 0.0
        %811 = vadd.xlane.f32.xlu0 %v810
        %v812 = vpop.xlane.xlu0 %811
        %v813 = vsel %vm738, %v793, 0.0
        %814 = vadd.xlane.f32.xlu0 %v813
        %v815 = vpop.xlane.xlu0 %814
        %v816 = vsel %vm738, %v794, 0.0
        %817 = vadd.xlane.f32.xlu0 %v816
        %v818 = vpop.xlane.xlu0 %817
        %v819 = vmax.f32 %v797, 1e-30
        %v820 = vmax.f32 %v800, 1e-30
        %v821 = vmax.f32 %v803, 1e-30
        %v822 = vmax.f32 %v806, 1e-30
        %v823 = vmax.f32 %v809, 1e-30
        %v824 = vmax.f32 %v812, 1e-30
        %v825 = vmax.f32 %v815, 1e-30
        %v826 = vmax.f32 %v818, 1e-30
        %v827 = vrcp.pop %v819
        %v828 = vmul.f32 %v819, %v827
        %v829 = vsub.f32 1.0, %v828
        %v830 = vmul.f32 %v827, %v829
        %v831 = vadd.f32 %v827, %v830
        %vm832 = vweird.f32 %v819
        %vm833 = vweird.f32 %v827
        %vm834 = vmor %vm832, %vm833
        %v835 = vsel %vm834, %v827, %v831
        %v836 = vand.u32 2147483647, %v819
        %vm837 = vcmp.eq.f32.partialorder %v836, 8.507059e+37
        %v838 = vand.u32 %v819, 2147483648
        %v839 = vor.u32 1.1754944e-38, %v838
        %v840 = vsel %vm837, %v839, %v835
        %v841 = vmul.f32 %v787, %v840
        %v842 = vrcp.pop %v820
        %v843 = vmul.f32 %v820, %v842
        %v844 = vsub.f32 1.0, %v843
        %v845 = vmul.f32 %v842, %v844
        %v846 = vadd.f32 %v842, %v845
        %vm847 = vweird.f32 %v820
        %vm848 = vweird.f32 %v842
        %vm849 = vmor %vm847, %vm848
        %v850 = vsel %vm849, %v842, %v846
        %v851 = vand.u32 2147483647, %v820
        %vm852 = vcmp.eq.f32.partialorder %v851, 8.507059e+37
        %v853 = vand.u32 %v820, 2147483648
        %v854 = vor.u32 1.1754944e-38, %v853
        %v855 = vsel %vm852, %v854, %v850
        %v856 = vmul.f32 %v788, %v855
        %v857 = vrcp.pop %v821
        %v858 = vmul.f32 %v821, %v857
        %v859 = vsub.f32 1.0, %v858
        %v860 = vmul.f32 %v857, %v859
        %v861 = vadd.f32 %v857, %v860
        %vm862 = vweird.f32 %v821
        %vm863 = vweird.f32 %v857
        %vm864 = vmor %vm862, %vm863
        %v865 = vsel %vm864, %v857, %v861
        %v866 = vand.u32 2147483647, %v821
        %vm867 = vcmp.eq.f32.partialorder %v866, 8.507059e+37
        %v868 = vand.u32 %v821, 2147483648
        %v869 = vor.u32 1.1754944e-38, %v868
        %v870 = vsel %vm867, %v869, %v865
        %v871 = vmul.f32 %v789, %v870
        %v872 = vrcp.pop %v822
        %v873 = vmul.f32 %v822, %v872
        %v874 = vsub.f32 1.0, %v873
        %v875 = vmul.f32 %v872, %v874
        %v876 = vadd.f32 %v872, %v875
        %vm877 = vweird.f32 %v822
        %vm878 = vweird.f32 %v872
        %vm879 = vmor %vm877, %vm878
        %v880 = vsel %vm879, %v872, %v876
        %v881 = vand.u32 2147483647, %v822
        %vm882 = vcmp.eq.f32.partialorder %v881, 8.507059e+37
        %v883 = vand.u32 %v822, 2147483648
        %v884 = vor.u32 1.1754944e-38, %v883
        %v885 = vsel %vm882, %v884, %v880
        %v886 = vmul.f32 %v790, %v885
        %v887 = vrcp.pop %v823
        %v888 = vmul.f32 %v823, %v887
        %v889 = vsub.f32 1.0, %v888
        %v890 = vmul.f32 %v887, %v889
        %v891 = vadd.f32 %v887, %v890
        %vm892 = vweird.f32 %v823
        %vm893 = vweird.f32 %v887
        %vm894 = vmor %vm892, %vm893
        %v895 = vsel %vm894, %v887, %v891
        %v896 = vand.u32 2147483647, %v823
        %vm897 = vcmp.eq.f32.partialorder %v896, 8.507059e+37
        %v898 = vand.u32 %v823, 2147483648
        %v899 = vor.u32 1.1754944e-38, %v898
        %v900 = vsel %vm897, %v899, %v895
        %v901 = vmul.f32 %v791, %v900
        %v902 = vrcp.pop %v824
        %v903 = vmul.f32 %v824, %v902
        %v904 = vsub.f32 1.0, %v903
        %v905 = vmul.f32 %v902, %v904
        %v906 = vadd.f32 %v902, %v905
        %vm907 = vweird.f32 %v824
        %vm908 = vweird.f32 %v902
        %vm909 = vmor %vm907, %vm908
        %v910 = vsel %vm909, %v902, %v906
        %v911 = vand.u32 2147483647, %v824
        %vm912 = vcmp.eq.f32.partialorder %v911, 8.507059e+37
        %v913 = vand.u32 %v824, 2147483648
        %v914 = vor.u32 1.1754944e-38, %v913
        %v915 = vsel %vm912, %v914, %v910
        %v916 = vmul.f32 %v792, %v915
        %v917 = vrcp.pop %v825
        %v918 = vmul.f32 %v825, %v917
        %v919 = vsub.f32 1.0, %v918
        %v920 = vmul.f32 %v917, %v919
        %v921 = vadd.f32 %v917, %v920
        %vm922 = vweird.f32 %v825
        %vm923 = vweird.f32 %v917
        %vm924 = vmor %vm922, %vm923
        %v925 = vsel %vm924, %v917, %v921
        %v926 = vand.u32 2147483647, %v825
        %vm927 = vcmp.eq.f32.partialorder %v926, 8.507059e+37
        %v928 = vand.u32 %v825, 2147483648
        %v929 = vor.u32 1.1754944e-38, %v928
        %v930 = vsel %vm927, %v929, %v925
        %v931 = vmul.f32 %v793, %v930
        %v932 = vrcp.pop %v826
        %v933 = vmul.f32 %v826, %v932
        %v934 = vsub.f32 1.0, %v933
        %v935 = vmul.f32 %v932, %v934
        %v936 = vadd.f32 %v932, %v935
        %vm937 = vweird.f32 %v826
        %vm938 = vweird.f32 %v932
        %vm939 = vmor %vm937, %vm938
        %v940 = vsel %vm939, %v932, %v936
        %v941 = vand.u32 2147483647, %v826
        %vm942 = vcmp.eq.f32.partialorder %v941, 8.507059e+37
        %v943 = vand.u32 %v826, 2147483648
        %v944 = vor.u32 1.1754944e-38, %v943
        %v945 = vsel %vm942, %v944, %v940
        %v946 = vmul.f32 %v794, %v945
        %v948 = vsel %vm738, %v841, 0
        %v951 = vsel %vm738, %v856, 0
        %v954 = vsel %vm738, %v871, 0
        %v957 = vsel %vm738, %v886, 0
        %v960 = vsel %vm738, %v901, 0
        %v963 = vsel %vm738, %v916, 0
        %v966 = vsel %vm738, %v931, 0
        %v969 = vsel %vm738, %v946, 0
        %971 = vmatpush.msra.mxu0 0.0
        %972 = vmatpush.msra.mxu0 0.0
        %973 = vmatpush.msra.mxu0 0.0
        %974 = vmatpush.msra.mxu0 0.0
        %975 = vmatpush.msra.mxu0 0.0
        %976 = vmatpush.msra.mxu0 0.0
        %977 = vmatpush.msra.mxu0 0.0
        %978 = vmatpush.msra.mxu0 0.0
        %979 = vmatpush.msra.mxu0 %v508
        %980 = vmatpush.msra.mxu0 %v505
        %981 = vmatpush.msra.mxu0 %v502
        %982 = vmatpush.msra.mxu0 %v499
        %983 = vmatpush.msra.mxu0 %v496
        %984 = vmatpush.msra.mxu0 %v493
        %985 = vmatpush.msra.mxu0 %v490
        %986 = vmatpush.msra.mxu0 %v487
        %987 = vmatmul.f32.gmra.mxu0 %v948
        %v988 = vpop.f32.mrf.mxu0
        %v989 = vadd.f32 0.0, %v988
        %990 = vmatmul.f32.gmra.mxu0 %v951
        %v991 = vpop.f32.mrf.mxu0
        %v992 = vadd.f32 0.0, %v991
        %993 = vmatmul.f32.gmra.mxu0 %v954
        %v994 = vpop.f32.mrf.mxu0
        %v995 = vadd.f32 0.0, %v994
        %996 = vmatmul.f32.gmra.mxu0 %v957
        %v997 = vpop.f32.mrf.mxu0
        %v998 = vadd.f32 0.0, %v997
        %999 = vmatmul.f32.gmra.mxu0 %v960
        %v1000 = vpop.f32.mrf.mxu0
        %v1001 = vadd.f32 0.0, %v1000
        %1002 = vmatmul.f32.gmra.mxu0 %v963
        %v1003 = vpop.f32.mrf.mxu0
        %v1004 = vadd.f32 0.0, %v1003
        %1005 = vmatmul.f32.gmra.mxu0 %v966
        %v1006 = vpop.f32.mrf.mxu0
        %v1007 = vadd.f32 0.0, %v1006
        %1008 = vmatmul.f32.gmra.mxu0 %v969
        %v1009 = vpop.f32.mrf.mxu0
        %v1010 = vadd.f32 0.0, %v1009
        %1011 = vdwg.mxu0
        %1020 = vrot.lane.b32.xlu0 %v597, 120
        %v1021 = vpop.permute.xlu0 %1020
        %1022 = vrot.lane.b32.xlu0 %v598, 120
        %v1023 = vpop.permute.xlu0 %1022
        %1024 = vrot.lane.b32.xlu0 %v599, 120
        %v1025 = vpop.permute.xlu0 %1024
        %1026 = vrot.lane.b32.xlu0 %v600, 120
        %v1027 = vpop.permute.xlu0 %1026
        %1028 = vrot.lane.b32.xlu0 %v601, 120
        %v1029 = vpop.permute.xlu0 %1028
        %1030 = vrot.lane.b32.xlu0 %v602, 120
        %v1031 = vpop.permute.xlu0 %1030
        %1032 = vrot.lane.b32.xlu0 %v603, 120
        %v1033 = vpop.permute.xlu0 %1032
        %1034 = vrot.lane.b32.xlu0 %v604, 120
        %v1035 = vpop.permute.xlu0 %1034
        %v1044 = vsel %vm605, %v1021, 0.0
        %1045 = vadd.xlane.f32.xlu0 %v1044
        %v1046 = vpop.xlane.xlu0 %1045
        %v1047 = vsel %vm605, %v1023, 0.0
        %1048 = vadd.xlane.f32.xlu0 %v1047
        %v1049 = vpop.xlane.xlu0 %1048
        %v1050 = vsel %vm605, %v1025, 0.0
        %1051 = vadd.xlane.f32.xlu0 %v1050
        %v1052 = vpop.xlane.xlu0 %1051
        %v1053 = vsel %vm605, %v1027, 0.0
        %1054 = vadd.xlane.f32.xlu0 %v1053
        %v1055 = vpop.xlane.xlu0 %1054
        %v1056 = vsel %vm605, %v1029, 0.0
        %1057 = vadd.xlane.f32.xlu0 %v1056
        %v1058 = vpop.xlane.xlu0 %1057
        %v1059 = vsel %vm605, %v1031, 0.0
        %1060 = vadd.xlane.f32.xlu0 %v1059
        %v1061 = vpop.xlane.xlu0 %1060
        %v1062 = vsel %vm605, %v1033, 0.0
        %1063 = vadd.xlane.f32.xlu0 %v1062
        %v1064 = vpop.xlane.xlu0 %1063
        %v1065 = vsel %vm605, %v1035, 0.0
        %1066 = vadd.xlane.f32.xlu0 %v1065
        %v1067 = vpop.xlane.xlu0 %1066
        %1076 = vrot.lane.b32.xlu0 %v633, 120
        %v1077 = vpop.permute.xlu0 %1076
        %1078 = vrot.lane.b32.xlu0 %v634, 120
        %v1079 = vpop.permute.xlu0 %1078
        %1080 = vrot.lane.b32.xlu0 %v635, 120
        %v1081 = vpop.permute.xlu0 %1080
        %1082 = vrot.lane.b32.xlu0 %v636, 120
        %v1083 = vpop.permute.xlu0 %1082
        %1084 = vrot.lane.b32.xlu0 %v637, 120
        %v1085 = vpop.permute.xlu0 %1084
        %1086 = vrot.lane.b32.xlu0 %v638, 120
        %v1087 = vpop.permute.xlu0 %1086
        %1088 = vrot.lane.b32.xlu0 %v639, 120
        %v1089 = vpop.permute.xlu0 %1088
        %1090 = vrot.lane.b32.xlu0 %v640, 120
        %v1091 = vpop.permute.xlu0 %1090
        %v1100 = vsel %vm605, %v1077, 0.0
        %1101 = vadd.xlane.f32.xlu0 %v1100
        %v1102 = vpop.xlane.xlu0 %1101
        %v1103 = vsel %vm605, %v1079, 0.0
        %1104 = vadd.xlane.f32.xlu0 %v1103
        %v1105 = vpop.xlane.xlu0 %1104
        %v1106 = vsel %vm605, %v1081, 0.0
        %1107 = vadd.xlane.f32.xlu0 %v1106
        %v1108 = vpop.xlane.xlu0 %1107
        %v1109 = vsel %vm605, %v1083, 0.0
        %1110 = vadd.xlane.f32.xlu0 %v1109
        %v1111 = vpop.xlane.xlu0 %1110
        %v1112 = vsel %vm605, %v1085, 0.0
        %1113 = vadd.xlane.f32.xlu0 %v1112
        %v1114 = vpop.xlane.xlu0 %1113
        %v1115 = vsel %vm605, %v1087, 0.0
        %1116 = vadd.xlane.f32.xlu0 %v1115
        %v1117 = vpop.xlane.xlu0 %1116
        %v1118 = vsel %vm605, %v1089, 0.0
        %1119 = vadd.xlane.f32.xlu0 %v1118
        %v1120 = vpop.xlane.xlu0 %1119
        %v1121 = vsel %vm605, %v1091, 0.0
        %1122 = vadd.xlane.f32.xlu0 %v1121
        %v1123 = vpop.xlane.xlu0 %1122
        %1124 = vxpose.xlu0.b32.start [1/16] %v1046, 128
        %1125 = vxpose.xlu0.b32.cont [2/16] %v1049, 128
        %1126 = vxpose.xlu0.b32.cont [3/16] %v1052, 128
        %1127 = vxpose.xlu0.b32.cont [4/16] %v1055, 128
        %1128 = vxpose.xlu0.b32.cont [5/16] %v1058, 128
        %1129 = vxpose.xlu0.b32.cont [6/16] %v1061, 128
        %1130 = vxpose.xlu0.b32.cont [7/16] %v1064, 128
        %1131 = vxpose.xlu0.b32.cont [8/16] %v1067, 128
        %1132 = vxpose.xlu0.b32.cont [9/16] 0.0, 128
        %1133 = vxpose.xlu0.b32.cont [10/16] 0.0, 128
        %1134 = vxpose.xlu0.b32.cont [11/16] 0.0, 128
        %1135 = vxpose.xlu0.b32.cont [12/16] 0.0, 128
        %1136 = vxpose.xlu0.b32.cont [13/16] 0.0, 128
        %1137 = vxpose.xlu0.b32.cont [14/16] 0.0, 128
        %1138 = vxpose.xlu0.b32.cont [15/16] 0.0, 128
        %1139 = vxpose.xlu0.b32.end [16/16] 0.0, 128
        %v1140 = vpop.trf.xlu0
        %v1141 = vpop.trf.xlu0
        %v1142 = vpop.trf.xlu0
        %v1143 = vpop.trf.xlu0
        %v1144 = vpop.trf.xlu0
        %v1145 = vpop.trf.xlu0
        %v1146 = vpop.trf.xlu0
        %v1147 = vpop.trf.xlu0
        %v1148 = vpop.trf.xlu0
        %v1149 = vpop.trf.xlu0
        %v1150 = vpop.trf.xlu0
        %v1151 = vpop.trf.xlu0
        %v1152 = vpop.trf.xlu0
        %v1153 = vpop.trf.xlu0
        %v1154 = vpop.trf.xlu0
        %v1155 = vpop.trf.xlu0
        %v1156 = vperm.slane %v1140, 0
        %v1157 = vadd.f32 %v1102, %v1156
        %v1158 = vadd.f32 %v1105, %v1156
        %v1159 = vadd.f32 %v1108, %v1156
        %v1160 = vadd.f32 %v1111, %v1156
        %v1161 = vadd.f32 %v1114, %v1156
        %v1162 = vadd.f32 %v1117, %v1156
        %v1163 = vadd.f32 %v1120, %v1156
        %v1164 = vadd.f32 %v1123, %v1156
        %vm1165 = vcmp.gt.f32.partialorder %v1157, 0.0
        %vm1166 = vcmp.gt.f32.partialorder %v1158, 0.0
        %vm1167 = vcmp.gt.f32.partialorder %v1159, 0.0
        %vm1168 = vcmp.gt.f32.partialorder %v1160, 0.0
        %vm1169 = vcmp.gt.f32.partialorder %v1161, 0.0
        %vm1170 = vcmp.gt.f32.partialorder %v1162, 0.0
        %vm1171 = vcmp.gt.f32.partialorder %v1163, 0.0
        %vm1172 = vcmp.gt.f32.partialorder %v1164, 0.0
        %v1173 = vmul.f32 %v1157, 0.2
        %v1174 = vmul.f32 %v1158, 0.2
        %v1175 = vmul.f32 %v1159, 0.2
        %v1176 = vmul.f32 %v1160, 0.2
        %v1177 = vmul.f32 %v1161, 0.2
        %v1178 = vmul.f32 %v1162, 0.2
        %v1179 = vmul.f32 %v1163, 0.2
        %v1180 = vmul.f32 %v1164, 0.2
        %v1181 = vsel %vm1165, %v1157, %v1173
        %v1182 = vsel %vm1166, %v1158, %v1174
        %v1183 = vsel %vm1167, %v1159, %v1175
        %v1184 = vsel %vm1168, %v1160, %v1176
        %v1185 = vsel %vm1169, %v1161, %v1177
        %v1186 = vsel %vm1170, %v1162, %v1178
        %v1187 = vsel %vm1171, %v1163, %v1179
        %v1188 = vsel %vm1172, %v1164, %v1180
        %v1189 = vsel %vm586, %v1181, -1e+30
        %v1190 = vsel %vm587, %v1182, -1e+30
        %v1191 = vsel %vm588, %v1183, -1e+30
        %v1192 = vsel %vm589, %v1184, -1e+30
        %v1193 = vsel %vm590, %v1185, -1e+30
        %v1194 = vsel %vm591, %v1186, -1e+30
        %v1195 = vsel %vm592, %v1187, -1e+30
        %v1196 = vsel %vm593, %v1188, -1e+30
        %v1197 = vsel %vm738, %v1189, -inf
        %1198 = vmax.xlane.f32.xlu0 %v1197
        %v1199 = vpop.xlane.xlu0 %1198
        %v1200 = vsel %vm738, %v1190, -inf
        %1201 = vmax.xlane.f32.xlu0 %v1200
        %v1202 = vpop.xlane.xlu0 %1201
        %v1203 = vsel %vm738, %v1191, -inf
        %1204 = vmax.xlane.f32.xlu0 %v1203
        %v1205 = vpop.xlane.xlu0 %1204
        %v1206 = vsel %vm738, %v1192, -inf
        %1207 = vmax.xlane.f32.xlu0 %v1206
        %v1208 = vpop.xlane.xlu0 %1207
        %v1209 = vsel %vm738, %v1193, -inf
        %1210 = vmax.xlane.f32.xlu0 %v1209
        %v1211 = vpop.xlane.xlu0 %1210
        %v1212 = vsel %vm738, %v1194, -inf
        %1213 = vmax.xlane.f32.xlu0 %v1212
        %v1214 = vpop.xlane.xlu0 %1213
        %v1215 = vsel %vm738, %v1195, -inf
        %1216 = vmax.xlane.f32.xlu0 %v1215
        %v1217 = vpop.xlane.xlu0 %1216
        %v1218 = vsel %vm738, %v1196, -inf
        %1219 = vmax.xlane.f32.xlu0 %v1218
        %v1220 = vpop.xlane.xlu0 %1219
        %v1221 = vsub.f32 %v1189, %v1199
        %v1222 = vsub.f32 %v1190, %v1202
        %v1223 = vsub.f32 %v1191, %v1205
        %v1224 = vsub.f32 %v1192, %v1208
        %v1225 = vsub.f32 %v1193, %v1211
        %v1226 = vsub.f32 %v1194, %v1214
        %v1227 = vsub.f32 %v1195, %v1217
        %v1228 = vsub.f32 %v1196, %v1220
        %v1229 = vmul.f32 %v1221, 1.442695
        %v1230 = vpow.pop %v1229
        %v1231 = vmul.f32 %v1222, 1.442695
        %v1232 = vpow.pop %v1231
        %v1233 = vmul.f32 %v1223, 1.442695
        %v1234 = vpow.pop %v1233
        %v1235 = vmul.f32 %v1224, 1.442695
        %v1236 = vpow.pop %v1235
        %v1237 = vmul.f32 %v1225, 1.442695
        %v1238 = vpow.pop %v1237
        %v1239 = vmul.f32 %v1226, 1.442695
        %v1240 = vpow.pop %v1239
        %v1241 = vmul.f32 %v1227, 1.442695
        %v1242 = vpow.pop %v1241
        %v1243 = vmul.f32 %v1228, 1.442695
        %v1244 = vpow.pop %v1243
        %v1245 = vsel %vm586, %v1230, 0.0
        %v1246 = vsel %vm587, %v1232, 0.0
        %v1247 = vsel %vm588, %v1234, 0.0
        %v1248 = vsel %vm589, %v1236, 0.0
        %v1249 = vsel %vm590, %v1238, 0.0
        %v1250 = vsel %vm591, %v1240, 0.0
        %v1251 = vsel %vm592, %v1242, 0.0
        %v1252 = vsel %vm593, %v1244, 0.0
        %v1253 = vsel %vm738, %v1245, 0.0
        %1254 = vadd.xlane.f32.xlu0 %v1253
        %v1255 = vpop.xlane.xlu0 %1254
        %v1256 = vsel %vm738, %v1246, 0.0
        %1257 = vadd.xlane.f32.xlu0 %v1256
        %v1258 = vpop.xlane.xlu0 %1257
        %v1259 = vsel %vm738, %v1247, 0.0
        %1260 = vadd.xlane.f32.xlu0 %v1259
        %v1261 = vpop.xlane.xlu0 %1260
        %v1262 = vsel %vm738, %v1248, 0.0
        %1263 = vadd.xlane.f32.xlu0 %v1262
        %v1264 = vpop.xlane.xlu0 %1263
        %v1265 = vsel %vm738, %v1249, 0.0
        %1266 = vadd.xlane.f32.xlu0 %v1265
        %v1267 = vpop.xlane.xlu0 %1266
        %v1268 = vsel %vm738, %v1250, 0.0
        %1269 = vadd.xlane.f32.xlu0 %v1268
        %v1270 = vpop.xlane.xlu0 %1269
        %v1271 = vsel %vm738, %v1251, 0.0
        %1272 = vadd.xlane.f32.xlu0 %v1271
        %v1273 = vpop.xlane.xlu0 %1272
        %v1274 = vsel %vm738, %v1252, 0.0
        %1275 = vadd.xlane.f32.xlu0 %v1274
        %v1276 = vpop.xlane.xlu0 %1275
        %v1277 = vmax.f32 %v1255, 1e-30
        %v1278 = vmax.f32 %v1258, 1e-30
        %v1279 = vmax.f32 %v1261, 1e-30
        %v1280 = vmax.f32 %v1264, 1e-30
        %v1281 = vmax.f32 %v1267, 1e-30
        %v1282 = vmax.f32 %v1270, 1e-30
        %v1283 = vmax.f32 %v1273, 1e-30
        %v1284 = vmax.f32 %v1276, 1e-30
        %v1285 = vrcp.pop %v1277
        %v1286 = vmul.f32 %v1277, %v1285
        %v1287 = vsub.f32 1.0, %v1286
        %v1288 = vmul.f32 %v1285, %v1287
        %v1289 = vadd.f32 %v1285, %v1288
        %vm1290 = vweird.f32 %v1277
        %vm1291 = vweird.f32 %v1285
        %vm1292 = vmor %vm1290, %vm1291
        %v1293 = vsel %vm1292, %v1285, %v1289
        %v1294 = vand.u32 2147483647, %v1277
        %vm1295 = vcmp.eq.f32.partialorder %v1294, 8.507059e+37
        %v1296 = vand.u32 %v1277, 2147483648
        %v1297 = vor.u32 1.1754944e-38, %v1296
        %v1298 = vsel %vm1295, %v1297, %v1293
        %v1299 = vmul.f32 %v1245, %v1298
        %v1300 = vrcp.pop %v1278
        %v1301 = vmul.f32 %v1278, %v1300
        %v1302 = vsub.f32 1.0, %v1301
        %v1303 = vmul.f32 %v1300, %v1302
        %v1304 = vadd.f32 %v1300, %v1303
        %vm1305 = vweird.f32 %v1278
        %vm1306 = vweird.f32 %v1300
        %vm1307 = vmor %vm1305, %vm1306
        %v1308 = vsel %vm1307, %v1300, %v1304
        %v1309 = vand.u32 2147483647, %v1278
        %vm1310 = vcmp.eq.f32.partialorder %v1309, 8.507059e+37
        %v1311 = vand.u32 %v1278, 2147483648
        %v1312 = vor.u32 1.1754944e-38, %v1311
        %v1313 = vsel %vm1310, %v1312, %v1308
        %v1314 = vmul.f32 %v1246, %v1313
        %v1315 = vrcp.pop %v1279
        %v1316 = vmul.f32 %v1279, %v1315
        %v1317 = vsub.f32 1.0, %v1316
        %v1318 = vmul.f32 %v1315, %v1317
        %v1319 = vadd.f32 %v1315, %v1318
        %vm1320 = vweird.f32 %v1279
        %vm1321 = vweird.f32 %v1315
        %vm1322 = vmor %vm1320, %vm1321
        %v1323 = vsel %vm1322, %v1315, %v1319
        %v1324 = vand.u32 2147483647, %v1279
        %vm1325 = vcmp.eq.f32.partialorder %v1324, 8.507059e+37
        %v1326 = vand.u32 %v1279, 2147483648
        %v1327 = vor.u32 1.1754944e-38, %v1326
        %v1328 = vsel %vm1325, %v1327, %v1323
        %v1329 = vmul.f32 %v1247, %v1328
        %v1330 = vrcp.pop %v1280
        %v1331 = vmul.f32 %v1280, %v1330
        %v1332 = vsub.f32 1.0, %v1331
        %v1333 = vmul.f32 %v1330, %v1332
        %v1334 = vadd.f32 %v1330, %v1333
        %vm1335 = vweird.f32 %v1280
        %vm1336 = vweird.f32 %v1330
        %vm1337 = vmor %vm1335, %vm1336
        %v1338 = vsel %vm1337, %v1330, %v1334
        %v1339 = vand.u32 2147483647, %v1280
        %vm1340 = vcmp.eq.f32.partialorder %v1339, 8.507059e+37
        %v1341 = vand.u32 %v1280, 2147483648
        %v1342 = vor.u32 1.1754944e-38, %v1341
        %v1343 = vsel %vm1340, %v1342, %v1338
        %v1344 = vmul.f32 %v1248, %v1343
        %v1345 = vrcp.pop %v1281
        %v1346 = vmul.f32 %v1281, %v1345
        %v1347 = vsub.f32 1.0, %v1346
        %v1348 = vmul.f32 %v1345, %v1347
        %v1349 = vadd.f32 %v1345, %v1348
        %vm1350 = vweird.f32 %v1281
        %vm1351 = vweird.f32 %v1345
        %vm1352 = vmor %vm1350, %vm1351
        %v1353 = vsel %vm1352, %v1345, %v1349
        %v1354 = vand.u32 2147483647, %v1281
        %vm1355 = vcmp.eq.f32.partialorder %v1354, 8.507059e+37
        %v1356 = vand.u32 %v1281, 2147483648
        %v1357 = vor.u32 1.1754944e-38, %v1356
        %v1358 = vsel %vm1355, %v1357, %v1353
        %v1359 = vmul.f32 %v1249, %v1358
        %v1360 = vrcp.pop %v1282
        %v1361 = vmul.f32 %v1282, %v1360
        %v1362 = vsub.f32 1.0, %v1361
        %v1363 = vmul.f32 %v1360, %v1362
        %v1364 = vadd.f32 %v1360, %v1363
        %vm1365 = vweird.f32 %v1282
        %vm1366 = vweird.f32 %v1360
        %vm1367 = vmor %vm1365, %vm1366
        %v1368 = vsel %vm1367, %v1360, %v1364
        %v1369 = vand.u32 2147483647, %v1282
        %vm1370 = vcmp.eq.f32.partialorder %v1369, 8.507059e+37
        %v1371 = vand.u32 %v1282, 2147483648
        %v1372 = vor.u32 1.1754944e-38, %v1371
        %v1373 = vsel %vm1370, %v1372, %v1368
        %v1374 = vmul.f32 %v1250, %v1373
        %v1375 = vrcp.pop %v1283
        %v1376 = vmul.f32 %v1283, %v1375
        %v1377 = vsub.f32 1.0, %v1376
        %v1378 = vmul.f32 %v1375, %v1377
        %v1379 = vadd.f32 %v1375, %v1378
        %vm1380 = vweird.f32 %v1283
        %vm1381 = vweird.f32 %v1375
        %vm1382 = vmor %vm1380, %vm1381
        %v1383 = vsel %vm1382, %v1375, %v1379
        %v1384 = vand.u32 2147483647, %v1283
        %vm1385 = vcmp.eq.f32.partialorder %v1384, 8.507059e+37
        %v1386 = vand.u32 %v1283, 2147483648
        %v1387 = vor.u32 1.1754944e-38, %v1386
        %v1388 = vsel %vm1385, %v1387, %v1383
        %v1389 = vmul.f32 %v1251, %v1388
        %v1390 = vrcp.pop %v1284
        %v1391 = vmul.f32 %v1284, %v1390
        %v1392 = vsub.f32 1.0, %v1391
        %v1393 = vmul.f32 %v1390, %v1392
        %v1394 = vadd.f32 %v1390, %v1393
        %vm1395 = vweird.f32 %v1284
        %vm1396 = vweird.f32 %v1390
        %vm1397 = vmor %vm1395, %vm1396
        %v1398 = vsel %vm1397, %v1390, %v1394
        %v1399 = vand.u32 2147483647, %v1284
        %vm1400 = vcmp.eq.f32.partialorder %v1399, 8.507059e+37
        %v1401 = vand.u32 %v1284, 2147483648
        %v1402 = vor.u32 1.1754944e-38, %v1401
        %v1403 = vsel %vm1400, %v1402, %v1398
        %v1404 = vmul.f32 %v1252, %v1403
        %1413 = vrot.lane.b32.xlu0 %v487, 120
        %v1414 = vpop.permute.xlu0 %1413
        %1415 = vrot.lane.b32.xlu0 %v490, 120
        %v1416 = vpop.permute.xlu0 %1415
        %1417 = vrot.lane.b32.xlu0 %v493, 120
        %v1418 = vpop.permute.xlu0 %1417
        %1419 = vrot.lane.b32.xlu0 %v496, 120
        %v1420 = vpop.permute.xlu0 %1419
        %1421 = vrot.lane.b32.xlu0 %v499, 120
        %v1422 = vpop.permute.xlu0 %1421
        %1423 = vrot.lane.b32.xlu0 %v502, 120
        %v1424 = vpop.permute.xlu0 %1423
        %1425 = vrot.lane.b32.xlu0 %v505, 120
        %v1426 = vpop.permute.xlu0 %1425
        %1427 = vrot.lane.b32.xlu0 %v508, 120
        %v1428 = vpop.permute.xlu0 %1427
        %v1438 = vsel %vm738, %v1299, 0
        %v1441 = vsel %vm738, %v1314, 0
        %v1444 = vsel %vm738, %v1329, 0
        %v1447 = vsel %vm738, %v1344, 0
        %v1450 = vsel %vm738, %v1359, 0
        %v1453 = vsel %vm738, %v1374, 0
        %v1456 = vsel %vm738, %v1389, 0
        %v1459 = vsel %vm738, %v1404, 0
        %1461 = vmatpush.msra.mxu0 0.0
        %1462 = vmatpush.msra.mxu0 0.0
        %1463 = vmatpush.msra.mxu0 0.0
        %1464 = vmatpush.msra.mxu0 0.0
        %1465 = vmatpush.msra.mxu0 0.0
        %1466 = vmatpush.msra.mxu0 0.0
        %1467 = vmatpush.msra.mxu0 0.0
        %1468 = vmatpush.msra.mxu0 0.0
        %1469 = vmatpush.msra.mxu0 %v1428
        %1470 = vmatpush.msra.mxu0 %v1426
        %1471 = vmatpush.msra.mxu0 %v1424
        %1472 = vmatpush.msra.mxu0 %v1422
        %1473 = vmatpush.msra.mxu0 %v1420
        %1474 = vmatpush.msra.mxu0 %v1418
        %1475 = vmatpush.msra.mxu0 %v1416
        %1476 = vmatpush.msra.mxu0 %v1414
        %1477 = vmatmul.f32.gmra.mxu0 %v1438
        %v1478 = vpop.f32.mrf.mxu0
        %v1479 = vadd.f32 0.0, %v1478
        %1480 = vmatmul.f32.gmra.mxu0 %v1441
        %v1481 = vpop.f32.mrf.mxu0
        %v1482 = vadd.f32 0.0, %v1481
        %1483 = vmatmul.f32.gmra.mxu0 %v1444
        %v1484 = vpop.f32.mrf.mxu0
        %v1485 = vadd.f32 0.0, %v1484
        %1486 = vmatmul.f32.gmra.mxu0 %v1447
        %v1487 = vpop.f32.mrf.mxu0
        %v1488 = vadd.f32 0.0, %v1487
        %1489 = vmatmul.f32.gmra.mxu0 %v1450
        %v1490 = vpop.f32.mrf.mxu0
        %v1491 = vadd.f32 0.0, %v1490
        %1492 = vmatmul.f32.gmra.mxu0 %v1453
        %v1493 = vpop.f32.mrf.mxu0
        %v1494 = vadd.f32 0.0, %v1493
        %1495 = vmatmul.f32.gmra.mxu0 %v1456
        %v1496 = vpop.f32.mrf.mxu0
        %v1497 = vadd.f32 0.0, %v1496
        %1498 = vmatmul.f32.gmra.mxu0 %v1459
        %v1499 = vpop.f32.mrf.mxu0
        %v1500 = vadd.f32 0.0, %v1499
        %1501 = vdwg.mxu0
        %1510 = vrot.lane.b32.xlu0 %v1479, 8
        %v1511 = vpop.permute.xlu0 %1510
        %1512 = vrot.lane.b32.xlu0 %v1482, 8
        %v1513 = vpop.permute.xlu0 %1512
        %1514 = vrot.lane.b32.xlu0 %v1485, 8
        %v1515 = vpop.permute.xlu0 %1514
        %1516 = vrot.lane.b32.xlu0 %v1488, 8
        %v1517 = vpop.permute.xlu0 %1516
        %1518 = vrot.lane.b32.xlu0 %v1491, 8
        %v1519 = vpop.permute.xlu0 %1518
        %1520 = vrot.lane.b32.xlu0 %v1494, 8
        %v1521 = vpop.permute.xlu0 %1520
        %1522 = vrot.lane.b32.xlu0 %v1497, 8
        %v1523 = vpop.permute.xlu0 %1522
        %1524 = vrot.lane.b32.xlu0 %v1500, 8
        %v1525 = vpop.permute.xlu0 %1524
        %v1534 = vsel %vm605, %v989, %v1511
        %v1535 = vsel %vm605, %v992, %v1513
        %v1536 = vsel %vm605, %v995, %v1515
        %v1537 = vsel %vm605, %v998, %v1517
        %v1538 = vsel %vm605, %v1001, %v1519
        %v1539 = vsel %vm605, %v1004, %v1521
        %v1540 = vsel %vm605, %v1007, %v1523
        %v1541 = vsel %vm605, %v1010, %v1525
        %v1543 = vperm.slane %v585, 0
        %v1545 = vadd.f32 %v1534, %v1543
        %v1546 = vadd.f32 %v1535, %v1543
        %v1547 = vadd.f32 %v1536, %v1543
        %v1548 = vadd.f32 %v1537, %v1543
        %v1549 = vadd.f32 %v1538, %v1543
        %v1550 = vadd.f32 %v1539, %v1543
        %v1551 = vadd.f32 %v1540, %v1543
        %v1552 = vadd.f32 %v1541, %v1543
        %v1553 = vmax.f32 %v1545, 0.0
        %v1554 = vmax.f32 %v1546, 0.0
        %v1555 = vmax.f32 %v1547, 0.0
        %v1556 = vmax.f32 %v1548, 0.0
        %v1557 = vmax.f32 %v1549, 0.0
        %v1558 = vmax.f32 %v1550, 0.0
        %v1559 = vmax.f32 %v1551, 0.0
        %v1560 = vmax.f32 %v1552, 0.0
        %v1561 = vld [vmem:[%s411] sm:$0xff]
        %v1562 = vld [vmem:[%s411 + $0x8] sm:$0xff]
        %v1563 = vld [vmem:[%s411 + $0x10] sm:$0xff]
        %v1564 = vld [vmem:[%s411 + $0x18] sm:$0xff]
        %v1565 = vld [vmem:[%s411 + $0x20] sm:$0xff]
        %v1566 = vld [vmem:[%s411 + $0x28] sm:$0xff]
        %v1567 = vld [vmem:[%s411 + $0x30] sm:$0xff]
        %v1568 = vld [vmem:[%s411 + $0x38] sm:$0xff]
        %v1569 = vmul.f32 %v1553, 0.5
        %v1570 = vmul.f32 %v1554, 0.5
        %v1571 = vmul.f32 %v1555, 0.5
        %v1572 = vmul.f32 %v1556, 0.5
        %v1573 = vmul.f32 %v1557, 0.5
        %v1574 = vmul.f32 %v1558, 0.5
        %v1575 = vmul.f32 %v1559, 0.5
        %v1576 = vmul.f32 %v1560, 0.5
        %v1577 = vadd.f32 %v1561, %v1569
        %v1578 = vadd.f32 %v1562, %v1570
        %v1579 = vadd.f32 %v1563, %v1571
        %v1580 = vadd.f32 %v1564, %v1572
        %v1581 = vadd.f32 %v1565, %v1573
        %v1582 = vadd.f32 %v1566, %v1574
        %v1583 = vadd.f32 %v1567, %v1575
        %v1584 = vadd.f32 %v1568, %v1576
        %1585 = vst.msk [vmem:[%s411] sm:$0xff] %vm444, %v1577
        %1586 = vst.msk [vmem:[%s411 + $0x8] sm:$0xff] %vm444, %v1578
        %1587 = vst.msk [vmem:[%s411 + $0x10] sm:$0xff] %vm444, %v1579
        %1588 = vst.msk [vmem:[%s411 + $0x18] sm:$0xff] %vm444, %v1580
        %1589 = vst.msk [vmem:[%s411 + $0x20] sm:$0xff] %vm444, %v1581
        %1590 = vst.msk [vmem:[%s411 + $0x28] sm:$0xff] %vm444, %v1582
        %1591 = vst.msk [vmem:[%s411 + $0x30] sm:$0xff] %vm444, %v1583
        %1592 = vst.msk [vmem:[%s411 + $0x38] sm:$0xff] %vm444, %v1584
        %s1593 = smul.u32 8, %s25
        %p1594 = scmp.lt.s32.totalorder %s1593, 7
        %s1595 = scalar_select %p1594, %s1593, 7
        %s1596 = smul.addr %s1595, 8
        %s1597 = scalar_lea.vmem %s7, %s1596
        // Predicated region
        $region57: #{tpu_custom_call.1} parent=47 // pred_check
          %p1598 = pneg %p230
        $region58: #{tpu_custom_call.1} parent=47 // pred_check_branch
          %1600 = sbr.rel (%p1598) target = $region60
        $region59: #{tpu_custom_call.1} parent=47 // pred_region
          %s1601 = smul.u32 8, %s25
        $region60: #{tpu_custom_call.1} parent=47 // pred_fallthru
          _
        // Predicated region
        $region61: #{tpu_custom_call.1} parent=47 // pred_check
          %p1602 = pneg %p230
        $region62: #{tpu_custom_call.1} parent=47 // pred_check_branch
          %1604 = sbr.rel (%p1602) target = $region64
        $region63: #{tpu_custom_call.1} parent=47 // pred_region
          %s1605 = smul.u32 8, %s25
          %p1606 = scmp.lt.s32.totalorder %s1605, 7
          %s1607 = scalar_select %p1606, %s1605, 7
          %s1608 = smul.addr %s1607, 8
          %s1609 = scalar_lea.vmem %s7, %s1608
        $region64: #{tpu_custom_call.1} parent=47 // pred_fallthru
          _
      $region48: #{tpu_custom_call.1} parent=5 // pred_fallthru
        _
      %p1610 = scmp.le.s32.totalorder 2, %s16
      // Predicated region
      $region65: #{tpu_custom_call.1} parent=5 // pred_check
        %p1611 = pneg %p1610
      $region66: #{tpu_custom_call.1} parent=5 // pred_check_branch
        %1613 = sbr.rel (%p1611) target = $region68
      $region67: #{tpu_custom_call.1} parent=5 // pred_region
        %s1614 = ssub.s32 %s16, 2
      $region68: #{tpu_custom_call.1} parent=5 // pred_fallthru
        _
    $region6: #{tpu_custom_call.1} parent=1 // loop_footer
      %s20 = sadd.s32 1, %s16
    $region7: #{tpu_custom_call.1} parent=1 // loop_footer_branch
      %15 = sbr.rel target = $region3
    $region8: #{tpu_custom_call.1} parent=1 // loop_exit
      _
    %1615 = vsyncpa [#allocation3], 1
    %s1616 = scalar_lea.sflag [#allocation3], 1
    %1617 = vsyncpa %s1616, 1

</llo_original>
